<compile_context>
chip_gen: v7x
topology: tpu7x:2x2x1
jax: 0.10.0
libtpu: 0.0.40
codegen_flags: <defaults>
</compile_context>

<pallas_src>
import functools

import jax
import jax.numpy as jnp
from jax.experimental import pallas as pl
from jax.experimental.pallas import tpu as pltpu

EPS = 1e-5


# ----------------------------------------------------------------------------
# Kernels
# ----------------------------------------------------------------------------
def conv1x1_kernel(*refs, apply_act):
    """1x1 conv = row-tile x channel matmul on the MXU.

    Optionally fuses the previous stage's BN affine + ReLU on the input, and
    emits 8-sublane-padded per-channel (sum, sum_sq) partials of the output
    (taken from the f32 accumulator) for the next BN's batch statistics.
    """
    f32 = jnp.float32
    if apply_act:
        x_ref, w_ref, scale_ref, shift_ref, y_ref, stats_ref = refs
        x = jnp.maximum(
            x_ref[...].astype(f32) * scale_ref[...] + shift_ref[...], 0.0)
        x = x.astype(w_ref.dtype)
    else:
        x_ref, w_ref, y_ref, stats_ref = refs
        x = x_ref[...]
        if x.dtype != w_ref.dtype:
            x = x.astype(w_ref.dtype)

    y = jnp.dot(x, w_ref[...], preferred_element_type=f32)   # f32 accumulator
    y_ref[...] = y.astype(y_ref.dtype)

    cout = y.shape[-1]
    ssum = jnp.sum(y, axis=0, keepdims=True)
    ssq = jnp.sum(y * y, axis=0, keepdims=True)
    stats_ref[...] = jnp.concatenate(
        [ssum, ssq, jnp.zeros((6, cout), f32)], axis=0).reshape(1, 8, cout)


def conv3x3_kernel(x_ref, top_ref, bot_ref, w_ref, scale_ref, shift_ref,
                   y_ref, stats_ref):
    """3x3 conv (stride 1, pad 1) for one H-strip of one image.

    Fuses BN1 affine + ReLU on the input (strip + 1-row halos), handles the
    dx shift with pltpu.roll on the W (sublane) axis + edge-column masking,
    builds a K=3P operand from three free dy slices, and accumulates three
    MXU matmuls in f32.  Emits BN2 partial statistics from the f32 acc.
    """
    f32 = jnp.float32
    _, TH, W, P = x_ref.shape
    s = pl.program_id(1)
    ns = pl.num_programs(1)

    scale = scale_ref[...]                 # (1, P)
    shift = shift_ref[...]

    def act(v):                            # BN1 affine + ReLU, in f32
        return jnp.maximum(v.astype(f32) * scale + shift, 0.0)

    body = act(x_ref[0])                                   # (TH, W, P)
    # Halo rows: real neighbor rows inside the image, zeros at image edges
    # (conv2 pads its *activated* input with literal zeros).
    top = act(top_ref[0]) * jnp.where(s > 0, 1.0, 0.0)     # (1, W, P)
    bot = act(bot_ref[0]) * jnp.where(s < ns - 1, 1.0, 0.0)
    padded = jnp.concatenate([top, body, bot], axis=0)     # (TH+2, W, P) f32

    cd = w_ref.dtype
    col = jax.lax.broadcasted_iota(jnp.int32, (1, W, P), 1)

    acc = jnp.zeros((TH * W, P), f32)
    for dx in range(3):
        if dx == 1:
            sh = padded
        else:
            # rolled[x] = padded[x + dx - 1]; mask the wrapped edge column.
            sh = pltpu.roll(padded, shift=(1 - dx) % W, axis=1)
            edge = 0 if dx == 0 else W - 1
            sh = sh * (col != edge).astype(f32)
        sh = sh.astype(cd)                 # cast before the lane concat
        taps = jnp.concatenate([sh[dy:dy + TH] for dy in range(3)], axis=-1)
        operand = taps.reshape(TH * W, 3 * P)              # (TH*W, 3P)
        acc = acc + jnp.dot(operand, w_ref[dx],
                            preferred_element_type=f32)    # (TH*W, P)

    y_ref[...] = acc.astype(y_ref.dtype).reshape(1, TH, W, P)

    ssum = jnp.sum(acc, axis=0, keepdims=True)
    ssq = jnp.sum(acc * acc, axis=0, keepdims=True)
    stats_ref[...] = jnp.concatenate(
        [ssum, ssq, jnp.zeros((6, P), jnp.float32)], axis=0).reshape(1, 1, 8, P)


def bn_add_relu_kernel(h_ref, res_ref, scale_ref, shift_ref, o_ref):
    """BN3 (precomputed batch-stat affine) + identity residual + final ReLU."""
    f32 = jnp.float32
    h = h_ref[...].astype(f32)
    r = res_ref[...].astype(f32)
    o_ref[...] = jnp.maximum(h * scale_ref[...] + shift_ref[...] + r,
                             0.0).astype(o_ref.dtype)


# ----------------------------------------------------------------------------
# Wrappers
# ----------------------------------------------------------------------------
def _nbytes(shape, dtype):
    n = 1
    for d in shape:
        n *= int(d)
    return n * jnp.dtype(dtype).itemsize


def _vmem_budget():
    """(vmem_limit cap, max row tile) for the current TPU generation."""
    try:
        cap = int(pltpu.get_tpu_info().vmem_capacity_bytes)
    except Exception:
        cap = 64 << 20                      # conservative (v7x-sized) fallback
    if cap >= (100 << 20):                  # v5e / v6e: 128 MiB physical VMEM
        return 100 << 20, 2048
    return 52 << 20, 512                    # v7x: 64 MiB physical VMEM


def _compiler_params(grid_rank, vmem_need):
    limit_cap, _ = _vmem_budget()
    limit = int(min(max(int(vmem_need) + (2 << 20), 8 << 20), limit_cap))
    return pltpu.CompilerParams(
        dimension_semantics=("parallel",) * grid_rank,
        vmem_limit_bytes=limit)


def _pick_row_tile(rows, itemsize, max_tile):
    """Largest dtype-aligned divisor of `rows` that is <= max_tile."""
    align = 16 if itemsize == 2 else (32 if itemsize == 1 else 8)
    for a in (align, 8):
        cap = (min(max_tile, rows) // a) * a
        for t in range(cap, 0, -a):
            if rows % t == 0:
                return t
    # TODO(synk): ragged row tiling (cdiv grid + masked stats/stores) for row
    # counts with no multiple-of-8 divisor <= max_tile.
    return rows


def _bn_scale_shift(partial_stats, gamma, beta, count):
    """Recombine per-tile (sum, sum_sq) partials (rows 0/1 of 8-padded blocks)
    into the training-mode BatchNorm affine y = x*scale + shift (biased var,
    eps=1e-5).  Partials are f32; at extreme activation means a Chan/Welford
    merge would be more robust to E[x^2]-mean^2 cancellation."""
    c = partial_stats.shape[-1]
    s = jnp.sum(partial_stats.reshape(-1, 8, c), axis=0)     # (8, C)
    mean = s[0] / count
    var = s[1] / count - mean * mean                         # biased variance
    scale = gamma.reshape(1, -1) * jax.lax.rsqrt(var.reshape(1, -1) + EPS)
    shift = beta.reshape(1, -1) - mean.reshape(1, -1) * scale
    return scale, shift


def _conv1x1_stats(x2d, w, scale, shift, *, apply_act, out_dtype):
    rows, cin = x2d.shape
    cout = w.shape[1]
    limit_cap, max_tile = _vmem_budget()
    tr = _pick_row_tile(rows, jnp.dtype(x2d.dtype).itemsize, max_tile)
    nb = rows // tr

    cdsz = jnp.dtype(w.dtype).itemsize
    blocks = (_nbytes((tr, cin), x2d.dtype) + _nbytes(w.shape, w.dtype)
              + _nbytes((tr, cout), out_dtype)
              + _nbytes((1, 8, cout), jnp.float32)
              + (2 * _nbytes((1, cin), jnp.float32) if apply_act else 0))
    trans = tr * cout * 4 * 2 + (tr * cin * (4 + cdsz) if apply_act else 0)
    need = 2 * blocks + trans                 # 2 buffers per blocked operand

    in_specs = [pl.BlockSpec((tr, cin), lambda i: (i, 0)),
                pl.BlockSpec((cin, cout), lambda i: (0, 0))]
    operands = [x2d, w]
    if apply_act:
        in_specs += [pl.BlockSpec((1, cin), lambda i: (0, 0)),
                     pl.BlockSpec((1, cin), lambda i: (0, 0))]
        operands += [scale, shift]

    y, stats = pl.pallas_call(
        functools.partial(conv1x1_kernel, apply_act=apply_act),
        grid=(nb,),
        in_specs=in_specs,
        out_specs=(
            pl.BlockSpec((tr, cout), lambda i: (i, 0)),
            pl.BlockSpec((1, 8, cout), lambda i: (i, 0, 0)),
        ),
        out_shape=(
            jax.ShapeDtypeStruct((rows, cout), out_dtype),
            jax.ShapeDtypeStruct((nb, 8, cout), jnp.float32),
        ),
        compiler_params=_compiler_params(1, need),
    )(*operands)
    return y, stats


def _conv3x3_stats(h1, w2dx, scale, shift, *, out_dtype):
    n, h, w, p = h1.shape
    limit_cap, _ = _vmem_budget()
    cdsz = jnp.dtype(out_dtype).itemsize

    def step_bytes(th):
        blocks = (_nbytes((1, th, w, p), h1.dtype)
                  + 2 * _nbytes((1, 1, w, p), h1.dtype)
                  + _nbytes(w2dx.shape, w2dx.dtype)
                  + 2 * _nbytes((1, p), jnp.float32)
                  + _nbytes((1, th, w, p), out_dtype)
                  + _nbytes((1, 1, 8, p), jnp.float32))
        pad = (th + 2) * w * p
        trans = (pad * (2 * 4 + cdsz)            # padded + rolled f32, cd copy
                 + th * w * 3 * p * cdsz * 2     # tap concat src + dst
                 + th * w * p * 4 * 2)           # f32 acc + matmul result
        return 2 * blocks + trans

    # Largest divisor strip that fits the per-step budget; among those, prefer
    # one that yields >= 4 grid steps (pipelining / v7x two-core sharding).
    target = min(limit_cap // 2, 28 << 20)
    fitting = [c for c in range(h, 0, -1) if h % c == 0
               and step_bytes(c) <= target]
    if not fitting:
        th = 1   # TODO(synk): tile over W as well for extremely wide images.
    else:
        th = fitting[0]
        for c in fitting:
            if n * (h // c) >= 4:
                th = c
                break
    ns = h // th
    need = step_bytes(th)

    h2, stats = pl.pallas_call(
        conv3x3_kernel,
        grid=(n, ns),
        in_specs=[
            pl.BlockSpec((1, th, w, p), lambda i, s: (i, s, 0, 0)),
            # 1-row halos: clamped row indices; zero-masked in-kernel at edges.
            pl.BlockSpec((1, 1, w, p),
                         lambda i, s: (i, jnp.maximum(s * th - 1, 0), 0, 0)),
            pl.BlockSpec((1, 1, w, p),
                         lambda i, s: (i, jnp.minimum((s + 1) * th, h - 1),
                                       0, 0)),
            pl.BlockSpec((3, 3 * p, p), lambda i, s: (0, 0, 0)),
            pl.BlockSpec((1, p), lambda i, s: (0, 0)),
            pl.BlockSpec((1, p), lambda i, s: (0, 0)),
        ],
        out_specs=(
            pl.BlockSpec((1, th, w, p), lambda i, s: (i, s, 0, 0)),
            pl.BlockSpec((1, 1, 8, p), lambda i, s: (i, s, 0, 0)),
        ),
        out_shape=(
            jax.ShapeDtypeStruct((n, h, w, p), out_dtype),
            jax.ShapeDtypeStruct((n, ns, 8, p), jnp.float32),
        ),
        compiler_params=_compiler_params(2, need),
    )(h1, h1, h1, w2dx, scale, shift)
    return h2, stats


def _bn_add_relu(h3, res, scale, shift):
    rows, c = h3.shape
    limit_cap, max_tile = _vmem_budget()
    tr = _pick_row_tile(rows, jnp.dtype(h3.dtype).itemsize, max_tile)
    nb = rows // tr
    blocks = (_nbytes((tr, c), h3.dtype) + _nbytes((tr, c), res.dtype)
              + 2 * _nbytes((1, c), jnp.float32)
              + _nbytes((tr, c), jnp.float32))
    need = 2 * blocks + 3 * tr * c * 4
    return pl.pallas_call(
        bn_add_relu_kernel,
        grid=(nb,),
        in_specs=[
            pl.BlockSpec((tr, c), lambda i: (i, 0)),
            pl.BlockSpec((tr, c), lambda i: (i, 0)),
            pl.BlockSpec((1, c), lambda i: (0, 0)),
            pl.BlockSpec((1, c), lambda i: (0, 0)),
        ],
        out_specs=pl.BlockSpec((tr, c), lambda i: (i, 0)),
        out_shape=jax.ShapeDtypeStruct((rows, c), jnp.float32),
        compiler_params=_compiler_params(1, need),
    )(h3, res, scale, shift)


@functools.partial(jax.jit, static_argnames=("compute_dtype",))
def bottleneck_forward(x_nhwc, w1, g1, b1, w2, g2, b2, w3, g3, b3, *,
                       compute_dtype=jnp.float32):
    n, h, w, cin = x_nhwc.shape
    p = w1.shape[1]
    cout = w3.shape[1]
    if cin != cout:
        raise ValueError("identity residual (downsample=None, stride=1) "
                         "requires inplanes == planes * expansion")
    rows = n * h * w
    cd = jnp.dtype(compute_dtype)
    f32 = jnp.float32

    x_res = x_nhwc.reshape(rows, cin).astype(f32)     # f32 residual path
    # In bf16 mode, feed conv1 a bf16 copy (halves the stage-1 HBM read);
    # the f32 copy is only read by the stage-4 residual add.
    x_in = x_res if cd == f32 else x_nhwc.reshape(rows, cin).astype(cd)
    w1c = w1.astype(cd)
    # HWIO (3,3,P,P) -> (dx, dy*P + cin, cout): per-dx (3P, P) weight slabs.
    w2dx = jnp.transpose(w2, (1, 0, 2, 3)).reshape(3, 3 * p, p).astype(cd)
    w3c = w3.astype(cd)

    # Stage 1: conv1 (1x1) + BN1 partial batch statistics.
    h1, s1 = _conv1x1_stats(x_in, w1c, None, None,
                            apply_act=False, out_dtype=cd)
    sc1, sh1 = _bn_scale_shift(s1, g1, b1, rows)

    # Stage 2: [BN1+ReLU fused] -> conv2 (3x3, roll-based dy-concat, 3 MXU
    #          accumulating matmuls per strip) + BN2 partial statistics.
    h2, s2 = _conv3x3_stats(h1.reshape(n, h, w, p), w2dx, sc1, sh1,
                            out_dtype=cd)
    sc2, sh2 = _bn_scale_shift(s2, g2, b2, rows)

    # Stage 3: [BN2+ReLU fused] -> conv3 (1x1) + BN3 partial statistics.
    h3, s3 = _conv1x1_stats(h2.reshape(rows, p), w3c, sc2, sh2,
                            apply_act=True, out_dtype=cd)
    sc3, sh3 = _bn_scale_shift(s3, g3, b3, rows)

    # Stage 4: BN3 + identity residual (f32) + final ReLU.
    out = _bn_add_relu(h3, x_res, sc3, sh3)
    return out.reshape(n, h, w, cout)


# ----------------------------------------------------------------------------
# Pure-JAX reference (NHWC convs + training-mode BN)
# ----------------------------------------------------------------------------
def reference(x_nhwc, w1, g1, b1, w2, g2, b2, w3, g3, b3):
    def conv(x, w, padding):
        return jax.lax.conv_general_dilated(
            x, w, window_strides=(1, 1), padding=padding,
            dimension_numbers=('NHWC', 'HWIO', 'NHWC'))

    def bn(h, g, b):
        mu = jnp.mean(h, axis=(0, 1, 2), keepdims=True)
        var = jnp.mean((h - mu) ** 2, axis=(0, 1, 2), keepdims=True)
        return (h - mu) * jax.lax.rsqrt(var + EPS) * g + b

    out = jnp.maximum(bn(conv(x_nhwc, w1[None, None], 'VALID'), g1, b1), 0.0)
    out = jnp.maximum(bn(conv(out, w2, [(1, 1), (1, 1)]), g2, b2), 0.0)
    out = bn(conv(out, w3[None, None], 'VALID'), g3, b3)
    return jnp.maximum(out + x_nhwc, 0.0)


if __name__ == "__main__":
    # Small shapes consistent with the module: inplanes = planes * expansion so
    # the identity residual is valid (downsample=None, stride=1).
    N, H, W = 2, 8, 8
    planes = 8
    inplanes = planes * 4          # expansion = 4
    cout = planes * 4

    key = jax.random.PRNGKey(0)
    ks = jax.random.split(key, 10)
    f32 = jnp.float32

    # PyTorch NCHW input -> kernel NHWC (channels last = lane axis).
    x_nchw = jax.random.normal(ks[0], (N, inplanes, H, W), dtype=f32)
    x_nhwc = jnp.transpose(x_nchw, (0, 2, 3, 1))

    # Deterministic parameter init (shapes per nn.Conv2d / nn.BatchNorm2d).
    w1 = 0.1 * jax.random.normal(ks[1], (inplanes, planes), dtype=f32)      # 1x1
    w2 = 0.1 * jax.random.normal(ks[2], (3, 3, planes, planes), dtype=f32)  # 3x3 HWIO
    w3 = 0.1 * jax.random.normal(ks[3], (planes, cout), dtype=f32)          # 1x1
    g1 = 1.0 + 0.1 * jax.random.normal(ks[4], (1, planes), dtype=f32)
    b1 = 0.1 * jax.random.normal(ks[5], (1, planes), dtype=f32)
    g2 = 1.0 + 0.1 * jax.random.normal(ks[6], (1, planes), dtype=f32)
    b2 = 0.1 * jax.random.normal(ks[7], (1, planes), dtype=f32)
    g3 = 1.0 + 0.1 * jax.random.normal(ks[8], (1, cout), dtype=f32)
    b3 = 0.1 * jax.random.normal(ks[9], (1, cout), dtype=f32)

    args = (x_nhwc, w1, g1, b1, w2, g2, b2, w3, g3, b3)
    ref = reference(*args)

    # f32 path: matches the (f32) PyTorch module.
    out = jax.block_until_ready(bottleneck_forward(*args))
    assert out.shape == (N, H, W, cout)
    err = float(jnp.max(jnp.abs(out - ref)))
    assert jnp.allclose(out, ref, atol=1e-3, rtol=1e-3), f"f32 max err {err}"

    # bf16 matmul path (MXU-friendly); BN stats/affine and the residual add
    # remain f32, so only matmul-input quantization error remains.
    out_bf16 = jax.block_until_ready(
        bottleneck_forward(*args, compute_dtype=jnp.bfloat16))
    assert out_bf16.shape == (N, H, W, cout)
    err_bf16 = float(jnp.max(jnp.abs(out_bf16 - ref)))
    assert jnp.allclose(out_bf16, ref, atol=1e-1, rtol=1e-1), (
        f"bf16 max err {err_bf16}")

    print("KERNEL_OK")
</pallas_src>

<mosaic_0001>
module attributes {stable_mosaic.version = 11 : i64} {
  func.func @conv1x1_kernel(%arg0: i32, %arg1: memref<128x32xf32, #tpu.memory_space<vmem>>, %arg2: memref<32x8xf32, #tpu.memory_space<vmem>>, %arg3: memref<128x8xf32, #tpu.memory_space<vmem>>, %arg4: memref<1x8x8xf32, #tpu.memory_space<vmem>>) attributes {dimension_semantics = [#tpu.dimension_semantics<parallel>], iteration_bounds = array<i64: 1>, scalar_prefetch = 0 : i64, scratch_operands = 0 : i64, tpu.core_type = #tpu.core_type<tc>, window_params = [{transform_indices = @transform_0, window_bounds = array<i64: 128, 32>}, {pipeline_mode = #tpu.pipeline_mode<synchronous>, transform_indices = @transform_1, window_bounds = array<i64: 32, 8>}, {transform_indices = @transform_2, window_bounds = array<i64: 128, 8>}, {transform_indices = @transform_3, window_bounds = array<i64: 1, 8, 8>}]} {
    %c0 = arith.constant 0 : index
    %c0_0 = arith.constant 0 : index
    %0 = vector.load %arg1[%c0, %c0_0] : memref<128x32xf32, #tpu.memory_space<vmem>>, vector<128x32xf32>
    %c0_1 = arith.constant 0 : index
    %c0_2 = arith.constant 0 : index
    %1 = vector.load %arg2[%c0_1, %c0_2] : memref<32x8xf32, #tpu.memory_space<vmem>>, vector<32x8xf32>
    %cst = arith.constant dense<0.000000e+00> : vector<128x8xf32>
    %2 = tpu.matmul %0, %1, %cst {dimension_numbers = #tpu.dot_dimension_numbers<[1], [0], [0], [1], [0, 0, 1, 1], [], []>} : vector<128x32xf32>, vector<32x8xf32>, vector<128x8xf32> -> vector<128x8xf32>
    %c0_3 = arith.constant 0 : index
    %c0_4 = arith.constant 0 : index
    %3 = vector.load %arg3[%c0_3, %c0_4] : memref<128x8xf32, #tpu.memory_space<vmem>>, vector<128x8xf32>
    tpu.vector_store %arg3[%c0_3, %c0_4], %2 {strides = array<i32>} : memref<128x8xf32, #tpu.memory_space<vmem>>, vector<128x8xf32>,
    %cst_5 = arith.constant dense<0.000000e+00> : vector<8xf32>
    %4 = vector.multi_reduction <add>, %2, %cst_5 [0] : vector<128x8xf32> to vector<8xf32>
    %5 = vector.shape_cast %4 : vector<8xf32> to vector<1x8xf32>
    %6 = arith.mulf %2, %2 : vector<128x8xf32>
    %cst_6 = arith.constant dense<0.000000e+00> : vector<8xf32>
    %7 = vector.multi_reduction <add>, %6, %cst_6 [0] : vector<128x8xf32> to vector<8xf32>
    %8 = vector.shape_cast %7 : vector<8xf32> to vector<1x8xf32>
    %cst_7 = arith.constant 0.000000e+00 : f32
    %9 = vector.broadcast %cst_7 : f32 to vector<6x8xf32>
    %10 = tpu.concatenate %5, %8, %9 in 0 : vector<1x8xf32>, vector<1x8xf32>, vector<6x8xf32> -> vector<8x8xf32>
    %11 = vector.shape_cast %10 : vector<8x8xf32> to vector<1x8x8xf32>
    %c0_8 = arith.constant 0 : index
    %c0_9 = arith.constant 0 : index
    %c0_10 = arith.constant 0 : index
    %12 = vector.load %arg4[%c0_8, %c0_9, %c0_10] : memref<1x8x8xf32, #tpu.memory_space<vmem>>, vector<1x8x8xf32>
    tpu.vector_store %arg4[%c0_8, %c0_9, %c0_10], %11 {strides = array<i32>} : memref<1x8x8xf32, #tpu.memory_space<vmem>>, vector<1x8x8xf32>,
    return
  }
  func.func @transform_0(%arg0: i32) -> (i32, i32) {
    %c0_i32 = arith.constant 0 : i32
    %c0_i32_0 = arith.constant 0 : i32
    return %arg0, %c0_i32 : i32, i32
  }
  func.func @transform_1(%arg0: i32) -> (i32, i32) {
    %c0_i32 = arith.constant 0 : i32
    %c0_i32_0 = arith.constant 0 : i32
    %c0_i32_1 = arith.constant 0 : i32
    return %c0_i32, %c0_i32_0 : i32, i32
  }
  func.func @transform_2(%arg0: i32) -> (i32, i32) {
    %c0_i32 = arith.constant 0 : i32
    %c0_i32_0 = arith.constant 0 : i32
    return %arg0, %c0_i32 : i32, i32
  }
  func.func @transform_3(%arg0: i32) -> (i32, i32, i32) {
    %c0_i32 = arith.constant 0 : i32
    %c0_i32_0 = arith.constant 0 : i32
    %c0_i32_1 = arith.constant 0 : i32
    return %arg0, %c0_i32, %c0_i32_0 : i32, i32, i32
  }
}

module attributes {stable_mosaic.version = 11 : i64} {
  func.func @conv3x3_kernel(%arg0: i32, %arg1: i32, %arg2: memref<1x4x8x8xf32, #tpu.memory_space<vmem>>, %arg3: memref<1x1x8x8xf32, #tpu.memory_space<vmem>>, %arg4: memref<1x1x8x8xf32, #tpu.memory_space<vmem>>, %arg5: memref<3x24x8xf32, #tpu.memory_space<vmem>>, %arg6: memref<1x8xf32, #tpu.memory_space<vmem>>, %arg7: memref<1x8xf32, #tpu.memory_space<vmem>>, %arg8: memref<1x4x8x8xf32, #tpu.memory_space<vmem>>, %arg9: memref<1x1x8x8xf32, #tpu.memory_space<vmem>>) attributes {dimension_semantics = [#tpu.dimension_semantics<parallel>, #tpu.dimension_semantics<parallel>], iteration_bounds = array<i64: 2, 2>, scalar_prefetch = 0 : i64, scratch_operands = 0 : i64, tpu.core_type = #tpu.core_type<tc>, window_params = [{transform_indices = @transform_0, window_bounds = array<i64: 1, 4, 8, 8>}, {transform_indices = @transform_1, window_bounds = array<i64: 1, 1, 8, 8>}, {transform_indices = @transform_2, window_bounds = array<i64: 1, 1, 8, 8>}, {pipeline_mode = #tpu.pipeline_mode<synchronous>, transform_indices = @transform_3, window_bounds = array<i64: 3, 24, 8>}, {pipeline_mode = #tpu.pipeline_mode<synchronous>, transform_indices = @transform_4, window_bounds = array<i64: 1, 8>}, {pipeline_mode = #tpu.pipeline_mode<synchronous>, transform_indices = @transform_5, window_bounds = array<i64: 1, 8>}, {transform_indices = @transform_6, window_bounds = array<i64: 1, 4, 8, 8>}, {transform_indices = @transform_7, window_bounds = array<i64: 1, 1, 8, 8>}]} {
    %c0 = arith.constant 0 : index
    %c0_0 = arith.constant 0 : index
    %0 = vector.load %arg6[%c0, %c0_0] : memref<1x8xf32, #tpu.memory_space<vmem>>, vector<1x8xf32>
    %c0_1 = arith.constant 0 : index
    %c0_2 = arith.constant 0 : index
    %1 = vector.load %arg7[%c0_1, %c0_2] : memref<1x8xf32, #tpu.memory_space<vmem>>, vector<1x8xf32>
    %c0_3 = arith.constant 0 : index
    %c0_4 = arith.constant 0 : index
    %c0_5 = arith.constant 0 : index
    %c0_6 = arith.constant 0 : index
    %2 = vector.load %arg2[%c0_3, %c0_4, %c0_5, %c0_6] : memref<1x4x8x8xf32, #tpu.memory_space<vmem>>, vector<1x4x8x8xf32>
    %3 = vector.shape_cast %2 : vector<1x4x8x8xf32> to vector<4x8x8xf32>
    %4 = vector.shape_cast %0 : vector<1x8xf32> to vector<1x1x8xf32>
    %5 = vector.broadcast %4 : vector<1x1x8xf32> to vector<4x8x8xf32>
    %6 = arith.mulf %3, %5 : vector<4x8x8xf32>
    %7 = vector.shape_cast %1 : vector<1x8xf32> to vector<1x1x8xf32>
    %8 = vector.broadcast %7 : vector<1x1x8xf32> to vector<4x8x8xf32>
    %9 = arith.addf %6, %8 : vector<4x8x8xf32>
    %cst = arith.constant 0.000000e+00 : f32
    %10 = vector.broadcast %cst : f32 to vector<4x8x8xf32>
    %11 = arith.maximumf %9, %10 : vector<4x8x8xf32>
    %c0_7 = arith.constant 0 : index
    %c0_8 = arith.constant 0 : index
    %c0_9 = arith.constant 0 : index
    %c0_10 = arith.constant 0 : index
    %12 = vector.load %arg3[%c0_7, %c0_8, %c0_9, %c0_10] : memref<1x1x8x8xf32, #tpu.memory_space<vmem>>, vector<1x1x8x8xf32>
    %13 = vector.shape_cast %12 : vector<1x1x8x8xf32> to vector<1x8x8xf32>
    %14 = vector.shape_cast %0 : vector<1x8xf32> to vector<1x1x8xf32>
    %15 = vector.broadcast %14 : vector<1x1x8xf32> to vector<1x8x8xf32>
    %16 = arith.mulf %13, %15 : vector<1x8x8xf32>
    %17 = vector.shape_cast %1 : vector<1x8xf32> to vector<1x1x8xf32>
    %18 = vector.broadcast %17 : vector<1x1x8xf32> to vector<1x8x8xf32>
    %19 = arith.addf %16, %18 : vector<1x8x8xf32>
    %cst_11 = arith.constant 0.000000e+00 : f32
    %20 = vector.broadcast %cst_11 : f32 to vector<1x8x8xf32>
    %21 = arith.maximumf %19, %20 : vector<1x8x8xf32>
    %c0_i32 = arith.constant 0 : i32
    %22 = arith.cmpi sgt, %arg1, %c0_i32 : i32
    %cst_12 = arith.constant 1.000000e+00 : f32
    %cst_13 = arith.constant 0.000000e+00 : f32
    %23 = arith.select %22, %cst_12, %cst_13 : f32
    %24 = vector.broadcast %23 : f32 to vector<1x8x8xf32>
    %25 = arith.mulf %21, %24 : vector<1x8x8xf32>
    %c0_14 = arith.constant 0 : index
    %c0_15 = arith.constant 0 : index
    %c0_16 = arith.constant 0 : index
    %c0_17 = arith.constant 0 : index
    %26 = vector.load %arg4[%c0_14, %c0_15, %c0_16, %c0_17] : memref<1x1x8x8xf32, #tpu.memory_space<vmem>>, vector<1x1x8x8xf32>
    %27 = vector.shape_cast %26 : vector<1x1x8x8xf32> to vector<1x8x8xf32>
    %28 = vector.shape_cast %0 : vector<1x8xf32> to vector<1x1x8xf32>
    %29 = vector.broadcast %28 : vector<1x1x8xf32> to vector<1x8x8xf32>
    %30 = arith.mulf %27, %29 : vector<1x8x8xf32>
    %31 = vector.shape_cast %1 : vector<1x8xf32> to vector<1x1x8xf32>
    %32 = vector.broadcast %31 : vector<1x1x8xf32> to vector<1x8x8xf32>
    %33 = arith.addf %30, %32 : vector<1x8x8xf32>
    %cst_18 = arith.constant 0.000000e+00 : f32
    %34 = vector.broadcast %cst_18 : f32 to vector<1x8x8xf32>
    %35 = arith.maximumf %33, %34 : vector<1x8x8xf32>
    %c1_i32 = arith.constant 1 : i32
    %36 = arith.cmpi slt, %arg1, %c1_i32 : i32
    %cst_19 = arith.constant 1.000000e+00 : f32
    %cst_20 = arith.constant 0.000000e+00 : f32
    %37 = arith.select %36, %cst_19, %cst_20 : f32
    %38 = vector.broadcast %37 : f32 to vector<1x8x8xf32>
    %39 = arith.mulf %35, %38 : vector<1x8x8xf32>
    %40 = tpu.concatenate %25, %11, %39 in 0 : vector<1x8x8xf32>, vector<4x8x8xf32>, vector<1x8x8xf32> -> vector<6x8x8xf32>
    %41 = tpu.iota {dimensions = array<i32: 1>} : vector<1x8x8xi32>
    %cst_21 = arith.constant 0.000000e+00 : f32
    %42 = vector.broadcast %cst_21 : f32 to vector<32x8xf32>
    %c1_i32_22 = arith.constant 1 : i32
    %43 = tpu.dynamic_rotate %40 by %c1_i32_22 dim 1 : vector<6x8x8xf32>, i32 -> vector<6x8x8xf32>
    %c0_i32_23 = arith.constant 0 : i32
    %44 = vector.broadcast %c0_i32_23 : i32 to vector<1x8x8xi32>
    %45 = arith.cmpi ne, %41, %44 : vector<1x8x8xi32>
    %46 = arith.extui %45 : vector<1x8x8xi1> to vector<1x8x8xi32>
    %47 = arith.sitofp %46 : vector<1x8x8xi32> to vector<1x8x8xf32>
    %48 = vector.broadcast %47 : vector<1x8x8xf32> to vector<6x8x8xf32>
    %49 = arith.mulf %43, %48 : vector<6x8x8xf32>
    %50 = vector.extract_strided_slice %49 {offsets = [0, 0, 0], sizes = [4, 8, 8], strides = [1, 1, 1]} : vector<6x8x8xf32> to vector<4x8x8xf32>
    %51 = vector.extract_strided_slice %49 {offsets = [1, 0, 0], sizes = [4, 8, 8], strides = [1, 1, 1]} : vector<6x8x8xf32> to vector<4x8x8xf32>
    %52 = vector.extract_strided_slice %49 {offsets = [2, 0, 0], sizes = [4, 8, 8], strides = [1, 1, 1]} : vector<6x8x8xf32> to vector<4x8x8xf32>
    %53 = tpu.concatenate %50, %51, %52 in 2 : vector<4x8x8xf32>, vector<4x8x8xf32>, vector<4x8x8xf32> -> vector<4x8x24xf32>
    %54 = vector.shape_cast %53 : vector<4x8x24xf32> to vector<32x24xf32>
    %c0_24 = arith.constant 0 : index
    %c0_25 = arith.constant 0 : index
    %c0_26 = arith.constant 0 : index
    %55 = vector.load %arg5[%c0_24, %c0_25, %c0_26] : memref<3x24x8xf32, #tpu.memory_space<vmem>>, vector<1x24x8xf32>
    %56 = vector.shape_cast %55 : vector<1x24x8xf32> to vector<24x8xf32>
    %cst_27 = arith.constant dense<0.000000e+00> : vector<32x8xf32>
    %57 = tpu.matmul %54, %56, %cst_27 {dimension_numbers = #tpu.dot_dimension_numbers<[1], [0], [0], [1], [0, 0, 1, 1], [], []>} : vector<32x24xf32>, vector<24x8xf32>, vector<32x8xf32> -> vector<32x8xf32>
    %58 = arith.addf %42, %57 : vector<32x8xf32>
    %59 = vector.extract_strided_slice %40 {offsets = [0, 0, 0], sizes = [4, 8, 8], strides = [1, 1, 1]} : vector<6x8x8xf32> to vector<4x8x8xf32>
    %60 = vector.extract_strided_slice %40 {offsets = [1, 0, 0], sizes = [4, 8, 8], strides = [1, 1, 1]} : vector<6x8x8xf32> to vector<4x8x8xf32>
    %61 = vector.extract_strided_slice %40 {offsets = [2, 0, 0], sizes = [4, 8, 8], strides = [1, 1, 1]} : vector<6x8x8xf32> to vector<4x8x8xf32>
    %62 = tpu.concatenate %59, %60, %61 in 2 : vector<4x8x8xf32>, vector<4x8x8xf32>, vector<4x8x8xf32> -> vector<4x8x24xf32>
    %63 = vector.shape_cast %62 : vector<4x8x24xf32> to vector<32x24xf32>
    %c1 = arith.constant 1 : index
    %c0_28 = arith.constant 0 : index
    %c0_29 = arith.constant 0 : index
    %64 = vector.load %arg5[%c1, %c0_28, %c0_29] : memref<3x24x8xf32, #tpu.memory_space<vmem>>, vector<1x24x8xf32>
    %65 = vector.shape_cast %64 : vector<1x24x8xf32> to vector<24x8xf32>
    %cst_30 = arith.constant dense<0.000000e+00> : vector<32x8xf32>
    %66 = tpu.matmul %63, %65, %cst_30 {dimension_numbers = #tpu.dot_dimension_numbers<[1], [0], [0], [1], [0, 0, 1, 1], [], []>} : vector<32x24xf32>, vector<24x8xf32>, vector<32x8xf32> -> vector<32x8xf32>
    %67 = arith.addf %58, %66 : vector<32x8xf32>
    %c7_i32 = arith.constant 7 : i32
    %68 = tpu.dynamic_rotate %40 by %c7_i32 dim 1 : vector<6x8x8xf32>, i32 -> vector<6x8x8xf32>
    %c7_i32_31 = arith.constant 7 : i32
    %69 = vector.broadcast %c7_i32_31 : i32 to vector<1x8x8xi32>
    %70 = arith.cmpi ne, %41, %69 : vector<1x8x8xi32>
    %71 = arith.extui %70 : vector<1x8x8xi1> to vector<1x8x8xi32>
    %72 = arith.sitofp %71 : vector<1x8x8xi32> to vector<1x8x8xf32>
    %73 = vector.broadcast %72 : vector<1x8x8xf32> to vector<6x8x8xf32>
    %74 = arith.mulf %68, %73 : vector<6x8x8xf32>
    %75 = vector.extract_strided_slice %74 {offsets = [0, 0, 0], sizes = [4, 8, 8], strides = [1, 1, 1]} : vector<6x8x8xf32> to vector<4x8x8xf32>
    %76 = vector.extract_strided_slice %74 {offsets = [1, 0, 0], sizes = [4, 8, 8], strides = [1, 1, 1]} : vector<6x8x8xf32> to vector<4x8x8xf32>
    %77 = vector.extract_strided_slice %74 {offsets = [2, 0, 0], sizes = [4, 8, 8], strides = [1, 1, 1]} : vector<6x8x8xf32> to vector<4x8x8xf32>
    %78 = tpu.concatenate %75, %76, %77 in 2 : vector<4x8x8xf32>, vector<4x8x8xf32>, vector<4x8x8xf32> -> vector<4x8x24xf32>
    %79 = vector.shape_cast %78 : vector<4x8x24xf32> to vector<32x24xf32>
    %c2 = arith.constant 2 : index
    %c0_32 = arith.constant 0 : index
    %c0_33 = arith.constant 0 : index
    %80 = vector.load %arg5[%c2, %c0_32, %c0_33] : memref<3x24x8xf32, #tpu.memory_space<vmem>>, vector<1x24x8xf32>
    %81 = vector.shape_cast %80 : vector<1x24x8xf32> to vector<24x8xf32>
    %cst_34 = arith.constant dense<0.000000e+00> : vector<32x8xf32>
    %82 = tpu.matmul %79, %81, %cst_34 {dimension_numbers = #tpu.dot_dimension_numbers<[1], [0], [0], [1], [0, 0, 1, 1], [], []>} : vector<32x24xf32>, vector<24x8xf32>, vector<32x8xf32> -> vector<32x8xf32>
    %83 = arith.addf %67, %82 : vector<32x8xf32>
    %84 = vector.shape_cast %83 : vector<32x8xf32> to vector<1x4x8x8xf32>
    %c0_35 = arith.constant 0 : index
    %c0_36 = arith.constant 0 : index
    %c0_37 = arith.constant 0 : index
    %c0_38 = arith.constant 0 : index
    %85 = vector.load %arg8[%c0_35, %c0_36, %c0_37, %c0_38] : memref<1x4x8x8xf32, #tpu.memory_space<vmem>>, vector<1x4x8x8xf32>
    tpu.vector_store %arg8[%c0_35, %c0_36, %c0_37, %c0_38], %84 {strides = array<i32>} : memref<1x4x8x8xf32, #tpu.memory_space<vmem>>, vector<1x4x8x8xf32>,
    %cst_39 = arith.constant dense<0.000000e+00> : vector<8xf32>
    %86 = vector.multi_reduction <add>, %83, %cst_39 [0] : vector<32x8xf32> to vector<8xf32>
    %87 = vector.shape_cast %86 : vector<8xf32> to vector<1x8xf32>
    %88 = arith.mulf %83, %83 : vector<32x8xf32>
    %cst_40 = arith.constant dense<0.000000e+00> : vector<8xf32>
    %89 = vector.multi_reduction <add>, %88, %cst_40 [0] : vector<32x8xf32> to vector<8xf32>
    %90 = vector.shape_cast %89 : vector<8xf32> to vector<1x8xf32>
    %cst_41 = arith.constant 0.000000e+00 : f32
    %91 = vector.broadcast %cst_41 : f32 to vector<6x8xf32>
    %92 = tpu.concatenate %87, %90, %91 in 0 : vector<1x8xf32>, vector<1x8xf32>, vector<6x8xf32> -> vector<8x8xf32>
    %93 = vector.shape_cast %92 : vector<8x8xf32> to vector<1x1x8x8xf32>
    %c0_42 = arith.constant 0 : index
    %c0_43 = arith.constant 0 : index
    %c0_44 = arith.constant 0 : index
    %c0_45 = arith.constant 0 : index
    %94 = vector.load %arg9[%c0_42, %c0_43, %c0_44, %c0_45] : memref<1x1x8x8xf32, #tpu.memory_space<vmem>>, vector<1x1x8x8xf32>
    tpu.vector_store %arg9[%c0_42, %c0_43, %c0_44, %c0_45], %93 {strides = array<i32>} : memref<1x1x8x8xf32, #tpu.memory_space<vmem>>, vector<1x1x8x8xf32>,
    return
  }
  func.func @transform_0(%arg0: i32, %arg1: i32) -> (i32, i32, i32, i32) {
    %c0_i32 = arith.constant 0 : i32
    %c0_i32_0 = arith.constant 0 : i32
    %c0_i32_1 = arith.constant 0 : i32
    return %arg0, %arg1, %c0_i32, %c0_i32_0 : i32, i32, i32, i32
  }
  func.func @transform_1(%arg0: i32, %arg1: i32) -> (i32, i32, i32, i32) {
    %c4_i32 = arith.constant 4 : i32
    %0 = arith.muli %arg1, %c4_i32 : i32
    %c1_i32 = arith.constant 1 : i32
    %1 = arith.subi %0, %c1_i32 : i32
    %c0_i32 = arith.constant 0 : i32
    %2 = arith.maxsi %1, %c0_i32 : i32
    %c0_i32_0 = arith.constant 0 : i32
    %c0_i32_1 = arith.constant 0 : i32
    %c0_i32_2 = arith.constant 0 : i32
    return %arg0, %2, %c0_i32_0, %c0_i32_1 : i32, i32, i32, i32
  }
  func.func @transform_2(%arg0: i32, %arg1: i32) -> (i32, i32, i32, i32) {
    %c1_i32 = arith.constant 1 : i32
    %0 = arith.addi %arg1, %c1_i32 : i32
    %c4_i32 = arith.constant 4 : i32
    %1 = arith.muli %0, %c4_i32 : i32
    %c7_i32 = arith.constant 7 : i32
    %2 = arith.minsi %1, %c7_i32 : i32
    %c0_i32 = arith.constant 0 : i32
    %c0_i32_0 = arith.constant 0 : i32
    %c0_i32_1 = arith.constant 0 : i32
    return %arg0, %2, %c0_i32, %c0_i32_0 : i32, i32, i32, i32
  }
  func.func @transform_3(%arg0: i32, %arg1: i32) -> (i32, i32, i32) {
    %c0_i32 = arith.constant 0 : i32
    %c0_i32_0 = arith.constant 0 : i32
    %c0_i32_1 = arith.constant 0 : i32
    %c0_i32_2 = arith.constant 0 : i32
    return %c0_i32, %c0_i32_0, %c0_i32_1 : i32, i32, i32
  }
  func.func @transform_4(%arg0: i32, %arg1: i32) -> (i32, i32) {
    %c0_i32 = arith.constant 0 : i32
    %c0_i32_0 = arith.constant 0 : i32
    %c0_i32_1 = arith.constant 0 : i32
    return %c0_i32, %c0_i32_0 : i32, i32
  }
  func.func @transform_5(%arg0: i32, %arg1: i32) -> (i32, i32) {
    %c0_i32 = arith.constant 0 : i32
    %c0_i32_0 = arith.constant 0 : i32
    %c0_i32_1 = arith.constant 0 : i32
    return %c0_i32, %c0_i32_0 : i32, i32
  }
  func.func @transform_6(%arg0: i32, %arg1: i32) -> (i32, i32, i32, i32) {
    %c0_i32 = arith.constant 0 : i32
    %c0_i32_0 = arith.constant 0 : i32
    %c0_i32_1 = arith.constant 0 : i32
    return %arg0, %arg1, %c0_i32, %c0_i32_0 : i32, i32, i32, i32
  }
  func.func @transform_7(%arg0: i32, %arg1: i32) -> (i32, i32, i32, i32) {
    %c0_i32 = arith.constant 0 : i32
    %c0_i32_0 = arith.constant 0 : i32
    %c0_i32_1 = arith.constant 0 : i32
    return %arg0, %arg1, %c0_i32, %c0_i32_0 : i32, i32, i32, i32
  }
}

module attributes {stable_mosaic.version = 11 : i64} {
  func.func @conv1x1_kernel(%arg0: i32, %arg1: memref<128x8xf32, #tpu.memory_space<vmem>>, %arg2: memref<8x32xf32, #tpu.memory_space<vmem>>, %arg3: memref<1x8xf32, #tpu.memory_space<vmem>>, %arg4: memref<1x8xf32, #tpu.memory_space<vmem>>, %arg5: memref<128x32xf32, #tpu.memory_space<vmem>>, %arg6: memref<1x8x32xf32, #tpu.memory_space<vmem>>) attributes {dimension_semantics = [#tpu.dimension_semantics<parallel>], iteration_bounds = array<i64: 1>, scalar_prefetch = 0 : i64, scratch_operands = 0 : i64, tpu.core_type = #tpu.core_type<tc>, window_params = [{transform_indices = @transform_0, window_bounds = array<i64: 128, 8>}, {pipeline_mode = #tpu.pipeline_mode<synchronous>, transform_indices = @transform_1, window_bounds = array<i64: 8, 32>}, {pipeline_mode = #tpu.pipeline_mode<synchronous>, transform_indices = @transform_2, window_bounds = array<i64: 1, 8>}, {pipeline_mode = #tpu.pipeline_mode<synchronous>, transform_indices = @transform_3, window_bounds = array<i64: 1, 8>}, {transform_indices = @transform_4, window_bounds = array<i64: 128, 32>}, {transform_indices = @transform_5, window_bounds = array<i64: 1, 8, 32>}]} {
    %c0 = arith.constant 0 : index
    %c0_0 = arith.constant 0 : index
    %0 = vector.load %arg1[%c0, %c0_0] : memref<128x8xf32, #tpu.memory_space<vmem>>, vector<128x8xf32>
    %c0_1 = arith.constant 0 : index
    %c0_2 = arith.constant 0 : index
    %1 = vector.load %arg3[%c0_1, %c0_2] : memref<1x8xf32, #tpu.memory_space<vmem>>, vector<1x8xf32>
    %2 = vector.broadcast %1 : vector<1x8xf32> to vector<128x8xf32>
    %3 = arith.mulf %0, %2 : vector<128x8xf32>
    %c0_3 = arith.constant 0 : index
    %c0_4 = arith.constant 0 : index
    %4 = vector.load %arg4[%c0_3, %c0_4] : memref<1x8xf32, #tpu.memory_space<vmem>>, vector<1x8xf32>
    %5 = vector.broadcast %4 : vector<1x8xf32> to vector<128x8xf32>
    %6 = arith.addf %3, %5 : vector<128x8xf32>
    %cst = arith.constant 0.000000e+00 : f32
    %7 = vector.broadcast %cst : f32 to vector<128x8xf32>
    %8 = arith.maximumf %6, %7 : vector<128x8xf32>
    %c0_5 = arith.constant 0 : index
    %c0_6 = arith.constant 0 : index
    %9 = vector.load %arg2[%c0_5, %c0_6] : memref<8x32xf32, #tpu.memory_space<vmem>>, vector<8x32xf32>
    %cst_7 = arith.constant dense<0.000000e+00> : vector<128x32xf32>
    %10 = tpu.matmul %8, %9, %cst_7 {dimension_numbers = #tpu.dot_dimension_numbers<[1], [0], [0], [1], [0, 0, 1, 1], [], []>} : vector<128x8xf32>, vector<8x32xf32>, vector<128x32xf32> -> vector<128x32xf32>
    %c0_8 = arith.constant 0 : index
    %c0_9 = arith.constant 0 : index
    %11 = vector.load %arg5[%c0_8, %c0_9] : memref<128x32xf32, #tpu.memory_space<vmem>>, vector<128x32xf32>
    tpu.vector_store %arg5[%c0_8, %c0_9], %10 {strides = array<i32>} : memref<128x32xf32, #tpu.memory_space<vmem>>, vector<128x32xf32>,
    %cst_10 = arith.constant dense<0.000000e+00> : vector<32xf32>
    %12 = vector.multi_reduction <add>, %10, %cst_10 [0] : vector<128x32xf32> to vector<32xf32>
    %13 = vector.shape_cast %12 : vector<32xf32> to vector<1x32xf32>
    %14 = arith.mulf %10, %10 : vector<128x32xf32>
    %cst_11 = arith.constant dense<0.000000e+00> : vector<32xf32>
    %15 = vector.multi_reduction <add>, %14, %cst_11 [0] : vector<128x32xf32> to vector<32xf32>
    %16 = vector.shape_cast %15 : vector<32xf32> to vector<1x32xf32>
    %cst_12 = arith.constant 0.000000e+00 : f32
    %17 = vector.broadcast %cst_12 : f32 to vector<6x32xf32>
    %18 = tpu.concatenate %13, %16, %17 in 0 : vector<1x32xf32>, vector<1x32xf32>, vector<6x32xf32> -> vector<8x32xf32>
    %19 = vector.shape_cast %18 : vector<8x32xf32> to vector<1x8x32xf32>
    %c0_13 = arith.constant 0 : index
    %c0_14 = arith.constant 0 : index
    %c0_15 = arith.constant 0 : index
    %20 = vector.load %arg6[%c0_13, %c0_14, %c0_15] : memref<1x8x32xf32, #tpu.memory_space<vmem>>, vector<1x8x32xf32>
    tpu.vector_store %arg6[%c0_13, %c0_14, %c0_15], %19 {strides = array<i32>} : memref<1x8x32xf32, #tpu.memory_space<vmem>>, vector<1x8x32xf32>,
    return
  }
  func.func @transform_0(%arg0: i32) -> (i32, i32) {
    %c0_i32 = arith.constant 0 : i32
    %c0_i32_0 = arith.constant 0 : i32
    return %arg0, %c0_i32 : i32, i32
  }
  func.func @transform_1(%arg0: i32) -> (i32, i32) {
    %c0_i32 = arith.constant 0 : i32
    %c0_i32_0 = arith.constant 0 : i32
    %c0_i32_1 = arith.constant 0 : i32
    return %c0_i32, %c0_i32_0 : i32, i32
  }
  func.func @transform_2(%arg0: i32) -> (i32, i32) {
    %c0_i32 = arith.constant 0 : i32
    %c0_i32_0 = arith.constant 0 : i32
    %c0_i32_1 = arith.constant 0 : i32
    return %c0_i32, %c0_i32_0 : i32, i32
  }
  func.func @transform_3(%arg0: i32) -> (i32, i32) {
    %c0_i32 = arith.constant 0 : i32
    %c0_i32_0 = arith.constant 0 : i32
    %c0_i32_1 = arith.constant 0 : i32
    return %c0_i32, %c0_i32_0 : i32, i32
  }
  func.func @transform_4(%arg0: i32) -> (i32, i32) {
    %c0_i32 = arith.constant 0 : i32
    %c0_i32_0 = arith.constant 0 : i32
    return %arg0, %c0_i32 : i32, i32
  }
  func.func @transform_5(%arg0: i32) -> (i32, i32, i32) {
    %c0_i32 = arith.constant 0 : i32
    %c0_i32_0 = arith.constant 0 : i32
    %c0_i32_1 = arith.constant 0 : i32
    return %arg0, %c0_i32, %c0_i32_0 : i32, i32, i32
  }
}

module attributes {stable_mosaic.version = 11 : i64} {
  func.func @bn_add_relu_kernel(%arg0: i32, %arg1: memref<128x32xf32, #tpu.memory_space<vmem>>, %arg2: memref<128x32xf32, #tpu.memory_space<vmem>>, %arg3: memref<1x32xf32, #tpu.memory_space<vmem>>, %arg4: memref<1x32xf32, #tpu.memory_space<vmem>>, %arg5: memref<128x32xf32, #tpu.memory_space<vmem>>) attributes {dimension_semantics = [#tpu.dimension_semantics<parallel>], iteration_bounds = array<i64: 1>, scalar_prefetch = 0 : i64, scratch_operands = 0 : i64, tpu.core_type = #tpu.core_type<tc>, window_params = [{transform_indices = @transform_0, window_bounds = array<i64: 128, 32>}, {transform_indices = @transform_1, window_bounds = array<i64: 128, 32>}, {pipeline_mode = #tpu.pipeline_mode<synchronous>, transform_indices = @transform_2, window_bounds = array<i64: 1, 32>}, {pipeline_mode = #tpu.pipeline_mode<synchronous>, transform_indices = @transform_3, window_bounds = array<i64: 1, 32>}, {transform_indices = @transform_4, window_bounds = array<i64: 128, 32>}]} {
    %c0 = arith.constant 0 : index
    %c0_0 = arith.constant 0 : index
    %0 = vector.load %arg1[%c0, %c0_0] : memref<128x32xf32, #tpu.memory_space<vmem>>, vector<128x32xf32>
    %c0_1 = arith.constant 0 : index
    %c0_2 = arith.constant 0 : index
    %1 = vector.load %arg2[%c0_1, %c0_2] : memref<128x32xf32, #tpu.memory_space<vmem>>, vector<128x32xf32>
    %c0_3 = arith.constant 0 : index
    %c0_4 = arith.constant 0 : index
    %2 = vector.load %arg3[%c0_3, %c0_4] : memref<1x32xf32, #tpu.memory_space<vmem>>, vector<1x32xf32>
    %3 = vector.broadcast %2 : vector<1x32xf32> to vector<128x32xf32>
    %4 = arith.mulf %0, %3 : vector<128x32xf32>
    %c0_5 = arith.constant 0 : index
    %c0_6 = arith.constant 0 : index
    %5 = vector.load %arg4[%c0_5, %c0_6] : memref<1x32xf32, #tpu.memory_space<vmem>>, vector<1x32xf32>
    %6 = vector.broadcast %5 : vector<1x32xf32> to vector<128x32xf32>
    %7 = arith.addf %4, %6 : vector<128x32xf32>
    %8 = arith.addf %7, %1 : vector<128x32xf32>
    %cst = arith.constant 0.000000e+00 : f32
    %9 = vector.broadcast %cst : f32 to vector<128x32xf32>
    %10 = arith.maximumf %8, %9 : vector<128x32xf32>
    %c0_7 = arith.constant 0 : index
    %c0_8 = arith.constant 0 : index
    %11 = vector.load %arg5[%c0_7, %c0_8] : memref<128x32xf32, #tpu.memory_space<vmem>>, vector<128x32xf32>
    tpu.vector_store %arg5[%c0_7, %c0_8], %10 {strides = array<i32>} : memref<128x32xf32, #tpu.memory_space<vmem>>, vector<128x32xf32>,
    return
  }
  func.func @transform_0(%arg0: i32) -> (i32, i32) {
    %c0_i32 = arith.constant 0 : i32
    %c0_i32_0 = arith.constant 0 : i32
    return %arg0, %c0_i32 : i32, i32
  }
  func.func @transform_1(%arg0: i32) -> (i32, i32) {
    %c0_i32 = arith.constant 0 : i32
    %c0_i32_0 = arith.constant 0 : i32
    return %arg0, %c0_i32 : i32, i32
  }
  func.func @transform_2(%arg0: i32) -> (i32, i32) {
    %c0_i32 = arith.constant 0 : i32
    %c0_i32_0 = arith.constant 0 : i32
    %c0_i32_1 = arith.constant 0 : i32
    return %c0_i32, %c0_i32_0 : i32, i32
  }
  func.func @transform_3(%arg0: i32) -> (i32, i32) {
    %c0_i32 = arith.constant 0 : i32
    %c0_i32_0 = arith.constant 0 : i32
    %c0_i32_1 = arith.constant 0 : i32
    return %c0_i32, %c0_i32_0 : i32, i32
  }
  func.func @transform_4(%arg0: i32) -> (i32, i32) {
    %c0_i32 = arith.constant 0 : i32
    %c0_i32_0 = arith.constant 0 : i32
    return %arg0, %c0_i32 : i32, i32
  }
}

</mosaic_0001>

<llo_original>
// kernel: bottleneck_forward.4
$region0: #{bottleneck_forward.4}
  #allocation0 [shape = 'u32[]', space=smem, size = 0x4, offset = 0x4, fixed_abs, tag = 'smem constant byte address 0x4 - core index']
  #allocation1 [shape = 'u32[144,128]{1,0:T(1,128)}', space=vmem, size = 0x12000, scoped, tag = 'internal scratch']
  %s0 = inlined_call_operand.vmem [shape: f32[128,32], index: 0, kind: input, shape index: {}]
  %s1 = inlined_call_operand.vmem [shape: f32[32,8], index: 1, kind: input, shape index: {}]
  %s2 = inlined_call_operand.vmem [shape: f32[128,8], index: 2, kind: output, shape index: {0}]
  %s3 = inlined_call_operand.vmem [shape: f32[1,8,8], index: 3, kind: output, shape index: {1}]
  %4 = xla_tuple %s2, %s3
  %s5 = sld [smem:[#allocation0]]
  $region26: #{bottleneck_forward.4} parent=0
    _
  %s7 = ssub.s32 1, %s5
  %s8 = scalar_select 0, %s7, %s5
  // Predicated region
  $region2: #{bottleneck_forward.4} parent=0 // pred_check
    _
  $region3: #{bottleneck_forward.4} parent=0 // pred_check_branch
    %10 = sbr.rel (0) target = $region5
  $region4: #{bottleneck_forward.4} parent=0 // pred_region
    _
  $region5: #{bottleneck_forward.4} parent=0 // pred_fallthru
    _
  // Predicated region
  $region6: #{bottleneck_forward.4} parent=0 // pred_check
    _
  $region7: #{bottleneck_forward.4} parent=0 // pred_check_branch
    %12 = sbr.rel (0) target = $region9
  $region8: #{bottleneck_forward.4} parent=0 // pred_region
    _
  $region9: #{bottleneck_forward.4} parent=0 // pred_fallthru
    _
  %v13 = vld [vmem:[%s0] sm:$0xff]
  %v14 = vld [vmem:[%s0 + $0x8] sm:$0xff]
  %v15 = vld [vmem:[%s0 + $0x10] sm:$0xff]
  %v16 = vld [vmem:[%s0 + $0x18] sm:$0xff]
  %v17 = vld [vmem:[%s0 + $0x20] sm:$0xff]
  %v18 = vld [vmem:[%s0 + $0x28] sm:$0xff]
  %v19 = vld [vmem:[%s0 + $0x30] sm:$0xff]
  %v20 = vld [vmem:[%s0 + $0x38] sm:$0xff]
  %v21 = vld [vmem:[%s0 + $0x40] sm:$0xff]
  %v22 = vld [vmem:[%s0 + $0x48] sm:$0xff]
  %v23 = vld [vmem:[%s0 + $0x50] sm:$0xff]
  %v24 = vld [vmem:[%s0 + $0x58] sm:$0xff]
  %v25 = vld [vmem:[%s0 + $0x60] sm:$0xff]
  %v26 = vld [vmem:[%s0 + $0x68] sm:$0xff]
  %v27 = vld [vmem:[%s0 + $0x70] sm:$0xff]
  %v28 = vld [vmem:[%s0 + $0x78] sm:$0xff]
  %v29 = vld [vmem:[%s1] sm:$0xff]
  %v30 = vld [vmem:[%s1 + $0x8] sm:$0xff]
  %v31 = vld [vmem:[%s1 + $0x10] sm:$0xff]
  %v32 = vld [vmem:[%s1 + $0x18] sm:$0xff]
  %vm33 = vcmask 261120
  %v35 = vsel %vm33, %v13, 0
  %v38 = vsel %vm33, %v14, 0
  %v41 = vsel %vm33, %v15, 0
  %v44 = vsel %vm33, %v16, 0
  %v47 = vsel %vm33, %v17, 0
  %v50 = vsel %vm33, %v18, 0
  %v53 = vsel %vm33, %v19, 0
  %v56 = vsel %vm33, %v20, 0
  %v59 = vsel %vm33, %v21, 0
  %v62 = vsel %vm33, %v22, 0
  %v65 = vsel %vm33, %v23, 0
  %v68 = vsel %vm33, %v24, 0
  %v71 = vsel %vm33, %v25, 0
  %v74 = vsel %vm33, %v26, 0
  %v77 = vsel %vm33, %v27, 0
  %v80 = vsel %vm33, %v28, 0
  %82 = vmatprep.subr.mxu0 0.0
  %83 = vmatpush1.msra.mxu0 %v29
  %84 = vmatprep.subr.mxu0 0.0
  %85 = vmatpush1.msra.mxu0 %v30
  %86 = vmatprep.subr.mxu0 0.0
  %87 = vmatpush1.msra.mxu0 %v31
  %88 = vmatprep.subr.mxu0 0.0
  %89 = vmatpush1.msra.mxu0 %v32
  %90 = vmatprep.subr.mxu0 0.0
  %91 = vmatpush1.msra.mxu0 0.0
  %92 = vmatprep.subr.mxu0 0.0
  %93 = vmatpush1.msra.mxu0 0.0
  %94 = vmatprep.subr.mxu0 0.0
  %95 = vmatpush1.msra.mxu0 0.0
  %96 = vmatprep.subr.mxu0 0.0
  %97 = vmatpush1.msra.mxu0 0.0
  %98 = vmatprep.subr.mxu0 0.0
  %99 = vmatpush1.msra.mxu0 0.0
  %100 = vmatprep.subr.mxu0 0.0
  %101 = vmatpush1.msra.mxu0 0.0
  %102 = vmatprep.subr.mxu0 0.0
  %103 = vmatpush1.msra.mxu0 0.0
  %104 = vmatprep.subr.mxu0 0.0
  %105 = vmatpush1.msra.mxu0 0.0
  %106 = vmatprep.subr.mxu0 0.0
  %107 = vmatpush1.msra.mxu0 0.0
  %108 = vmatprep.subr.mxu0 0.0
  %109 = vmatpush1.msra.mxu0 0.0
  %110 = vmatprep.subr.mxu0 0.0
  %111 = vmatpush1.msra.mxu0 0.0
  %112 = vmatprep.subr.mxu0 0.0
  %113 = vmatpush1.msra.mxu0 0.0
  %114 = vmatprep.subr.mxu0 0.0
  %115 = vmatpush1.msra.mxu0 0.0
  %116 = vmatprep.subr.mxu0 0.0
  %117 = vmatpush1.msra.mxu0 0.0
  %118 = vmatprep.subr.mxu0 0.0
  %119 = vmatpush1.msra.mxu0 0.0
  %120 = vmatprep.subr.mxu0 0.0
  %121 = vmatpush1.msra.mxu0 0.0
  %122 = vmatprep.subr.mxu0 0.0
  %123 = vmatpush1.msra.mxu0 0.0
  %124 = vmatprep.subr.mxu0 0.0
  %125 = vmatpush1.msra.mxu0 0.0
  %126 = vmatprep.subr.mxu0 0.0
  %127 = vmatpush1.msra.mxu0 0.0
  %128 = vmatprep.subr.mxu0 0.0
  %129 = vmatpush1.msra.mxu0 0.0
  %130 = vmatprep.subr.mxu0 0.0
  %131 = vmatpush1.msra.mxu0 0.0
  %132 = vmatprep.subr.mxu0 0.0
  %133 = vmatpush1.msra.mxu0 0.0
  %134 = vmatprep.subr.mxu0 0.0
  %135 = vmatpush1.msra.mxu0 0.0
  %136 = vmatprep.subr.mxu0 0.0
  %137 = vmatpush1.msra.mxu0 0.0
  %138 = vmatprep.subr.mxu0 0.0
  %139 = vmatpush1.msra.mxu0 0.0
  %140 = vmatprep.subr.mxu0 0.0
  %141 = vmatpush1.msra.mxu0 0.0
  %142 = vmatprep.subr.mxu0 0.0
  %143 = vmatpush1.msra.mxu0 0.0
  %144 = vmatprep.subr.mxu0 0.0
  %145 = vmatpush1.msra.mxu0 0.0
  %146 = vmatprep.mubr.f32.mxu0 0.0
  %147 = vmatmul.mubr.f32.gmra.mrb[0].mxu0 %v35
  %v148 = vpop.f32.mrb[0].mxu0
  %v149 = vadd.f32 0.0, %v148
  %v150 = vpop.f32.mrb[0].mxu0
  %151 = vmatprep.mubr.f32.mxu0 0.0
  %152 = vmatmul.mubr.f32.gmra.mrb[0].mxu0 %v38
  %v153 = vpop.f32.mrb[0].mxu0
  %v154 = vadd.f32 0.0, %v153
  %v155 = vpop.f32.mrb[0].mxu0
  %156 = vmatprep.mubr.f32.mxu0 0.0
  %157 = vmatmul.mubr.f32.gmra.mrb[0].mxu0 %v41
  %v158 = vpop.f32.mrb[0].mxu0
  %v159 = vadd.f32 0.0, %v158
  %v160 = vpop.f32.mrb[0].mxu0
  %161 = vmatprep.mubr.f32.mxu0 0.0
  %162 = vmatmul.mubr.f32.gmra.mrb[0].mxu0 %v44
  %v163 = vpop.f32.mrb[0].mxu0
  %v164 = vadd.f32 0.0, %v163
  %v165 = vpop.f32.mrb[0].mxu0
  %166 = vmatprep.mubr.f32.mxu0 0.0
  %167 = vmatmul.mubr.f32.gmra.mrb[0].mxu0 %v47
  %v168 = vpop.f32.mrb[0].mxu0
  %v169 = vadd.f32 0.0, %v168
  %v170 = vpop.f32.mrb[0].mxu0
  %171 = vmatprep.mubr.f32.mxu0 0.0
  %172 = vmatmul.mubr.f32.gmra.mrb[0].mxu0 %v50
  %v173 = vpop.f32.mrb[0].mxu0
  %v174 = vadd.f32 0.0, %v173
  %v175 = vpop.f32.mrb[0].mxu0
  %176 = vmatprep.mubr.f32.mxu0 0.0
  %177 = vmatmul.mubr.f32.gmra.mrb[0].mxu0 %v53
  %v178 = vpop.f32.mrb[0].mxu0
  %v179 = vadd.f32 0.0, %v178
  %v180 = vpop.f32.mrb[0].mxu0
  %181 = vmatprep.mubr.f32.mxu0 0.0
  %182 = vmatmul.mubr.f32.gmra.mrb[0].mxu0 %v56
  %v183 = vpop.f32.mrb[0].mxu0
  %v184 = vadd.f32 0.0, %v183
  %v185 = vpop.f32.mrb[0].mxu0
  %186 = vmatprep.mubr.f32.mxu0 0.0
  %187 = vmatmul.mubr.f32.gmra.mrb[0].mxu0 %v59
  %v188 = vpop.f32.mrb[0].mxu0
  %v189 = vadd.f32 0.0, %v188
  %v190 = vpop.f32.mrb[0].mxu0
  %191 = vmatprep.mubr.f32.mxu0 0.0
  %192 = vmatmul.mubr.f32.gmra.mrb[0].mxu0 %v62
  %v193 = vpop.f32.mrb[0].mxu0
  %v194 = vadd.f32 0.0, %v193
  %v195 = vpop.f32.mrb[0].mxu0
  %196 = vmatprep.mubr.f32.mxu0 0.0
  %197 = vmatmul.mubr.f32.gmra.mrb[0].mxu0 %v65
  %v198 = vpop.f32.mrb[0].mxu0
  %v199 = vadd.f32 0.0, %v198
  %v200 = vpop.f32.mrb[0].mxu0
  %201 = vmatprep.mubr.f32.mxu0 0.0
  %202 = vmatmul.mubr.f32.gmra.mrb[0].mxu0 %v68
  %v203 = vpop.f32.mrb[0].mxu0
  %v204 = vadd.f32 0.0, %v203
  %v205 = vpop.f32.mrb[0].mxu0
  %206 = vmatprep.mubr.f32.mxu0 0.0
  %207 = vmatmul.mubr.f32.gmra.mrb[0].mxu0 %v71
  %v208 = vpop.f32.mrb[0].mxu0
  %v209 = vadd.f32 0.0, %v208
  %v210 = vpop.f32.mrb[0].mxu0
  %211 = vmatprep.mubr.f32.mxu0 0.0
  %212 = vmatmul.mubr.f32.gmra.mrb[0].mxu0 %v74
  %v213 = vpop.f32.mrb[0].mxu0
  %v214 = vadd.f32 0.0, %v213
  %v215 = vpop.f32.mrb[0].mxu0
  %216 = vmatprep.mubr.f32.mxu0 0.0
  %217 = vmatmul.mubr.f32.gmra.mrb[0].mxu0 %v77
  %v218 = vpop.f32.mrb[0].mxu0
  %v219 = vadd.f32 0.0, %v218
  %v220 = vpop.f32.mrb[0].mxu0
  %221 = vmatprep.mubr.f32.mxu0 0.0
  %222 = vmatmul.mubr.f32.gmra.mrb[0].mxu0 %v80
  %v223 = vpop.f32.mrb[0].mxu0
  %v224 = vadd.f32 0.0, %v223
  %v225 = vpop.f32.mrb[0].mxu0
  %226 = vdwg.mxu0
  %vm227 = vcmask 64512
  %228 = vst.msk [vmem:[%s2] sm:$0xff] %vm227, %v149
  %229 = vst.msk [vmem:[%s2 + $0x8] sm:$0xff] %vm227, %v154
  %230 = vst.msk [vmem:[%s2 + $0x10] sm:$0xff] %vm227, %v159
  %231 = vst.msk [vmem:[%s2 + $0x18] sm:$0xff] %vm227, %v164
  %232 = vst.msk [vmem:[%s2 + $0x20] sm:$0xff] %vm227, %v169
  %233 = vst.msk [vmem:[%s2 + $0x28] sm:$0xff] %vm227, %v174
  %234 = vst.msk [vmem:[%s2 + $0x30] sm:$0xff] %vm227, %v179
  %235 = vst.msk [vmem:[%s2 + $0x38] sm:$0xff] %vm227, %v184
  %236 = vst.msk [vmem:[%s2 + $0x40] sm:$0xff] %vm227, %v189
  %237 = vst.msk [vmem:[%s2 + $0x48] sm:$0xff] %vm227, %v194
  %238 = vst.msk [vmem:[%s2 + $0x50] sm:$0xff] %vm227, %v199
  %239 = vst.msk [vmem:[%s2 + $0x58] sm:$0xff] %vm227, %v204
  %240 = vst.msk [vmem:[%s2 + $0x60] sm:$0xff] %vm227, %v209
  %241 = vst.msk [vmem:[%s2 + $0x68] sm:$0xff] %vm227, %v214
  %242 = vst.msk [vmem:[%s2 + $0x70] sm:$0xff] %vm227, %v219
  %243 = vst.msk [vmem:[%s2 + $0x78] sm:$0xff] %vm227, %v224
  %v244 = vsel %vm227, %v149, 0.0
  %v245 = vsel %vm227, %v154, 0.0
  %v246 = vadd.f32 %v244, %v245
  %v247 = vsel %vm227, %v159, 0.0
  %v248 = vadd.f32 %v246, %v247
  %v249 = vsel %vm227, %v164, 0.0
  %v250 = vadd.f32 %v248, %v249
  %v251 = vsel %vm227, %v169, 0.0
  %v252 = vadd.f32 %v250, %v251
  %v253 = vsel %vm227, %v174, 0.0
  %v254 = vadd.f32 %v252, %v253
  %v255 = vsel %vm227, %v179, 0.0
  %v256 = vadd.f32 %v254, %v255
  %v257 = vsel %vm227, %v184, 0.0
  %v258 = vadd.f32 %v256, %v257
  %v259 = vsel %vm227, %v189, 0.0
  %v260 = vadd.f32 %v258, %v259
  %v261 = vsel %vm227, %v194, 0.0
  %v262 = vadd.f32 %v260, %v261
  %v263 = vsel %vm227, %v199, 0.0
  %v264 = vadd.f32 %v262, %v263
  %v265 = vsel %vm227, %v204, 0.0
  %v266 = vadd.f32 %v264, %v265
  %v267 = vsel %vm227, %v209, 0.0
  %v268 = vadd.f32 %v266, %v267
  %v269 = vsel %vm227, %v214, 0.0
  %v270 = vadd.f32 %v268, %v269
  %v271 = vsel %vm227, %v219, 0.0
  %v272 = vadd.f32 %v270, %v271
  %v273 = vsel %vm227, %v224, 0.0
  %v274 = vadd.f32 %v272, %v273
  %v275 = vrot.slane %v274, 4
  %v276 = vadd.f32 %v274, %v275
  %v277 = vrot.slane %v276, 2
  %v278 = vadd.f32 %v276, %v277
  %v279 = vrot.slane %v278, 1
  %v280 = vadd.f32 %v278, %v279
  %v281 = vmul.f32 %v149, %v149
  %v282 = vmul.f32 %v154, %v154
  %v283 = vmul.f32 %v159, %v159
  %v284 = vmul.f32 %v164, %v164
  %v285 = vmul.f32 %v169, %v169
  %v286 = vmul.f32 %v174, %v174
  %v287 = vmul.f32 %v179, %v179
  %v288 = vmul.f32 %v184, %v184
  %v289 = vmul.f32 %v189, %v189
  %v290 = vmul.f32 %v194, %v194
  %v291 = vmul.f32 %v199, %v199
  %v292 = vmul.f32 %v204, %v204
  %v293 = vmul.f32 %v209, %v209
  %v294 = vmul.f32 %v214, %v214
  %v295 = vmul.f32 %v219, %v219
  %v296 = vmul.f32 %v224, %v224
  %v297 = vsel %vm227, %v281, 0.0
  %v298 = vsel %vm227, %v282, 0.0
  %v299 = vadd.f32 %v297, %v298
  %v300 = vsel %vm227, %v283, 0.0
  %v301 = vadd.f32 %v299, %v300
  %v302 = vsel %vm227, %v284, 0.0
  %v303 = vadd.f32 %v301, %v302
  %v304 = vsel %vm227, %v285, 0.0
  %v305 = vadd.f32 %v303, %v304
  %v306 = vsel %vm227, %v286, 0.0
  %v307 = vadd.f32 %v305, %v306
  %v308 = vsel %vm227, %v287, 0.0
  %v309 = vadd.f32 %v307, %v308
  %v310 = vsel %vm227, %v288, 0.0
  %v311 = vadd.f32 %v309, %v310
  %v312 = vsel %vm227, %v289, 0.0
  %v313 = vadd.f32 %v311, %v312
  %v314 = vsel %vm227, %v290, 0.0
  %v315 = vadd.f32 %v313, %v314
  %v316 = vsel %vm227, %v291, 0.0
  %v317 = vadd.f32 %v315, %v316
  %v318 = vsel %vm227, %v292, 0.0
  %v319 = vadd.f32 %v317, %v318
  %v320 = vsel %vm227, %v293, 0.0
  %v321 = vadd.f32 %v319, %v320
  %v322 = vsel %vm227, %v294, 0.0
  %v323 = vadd.f32 %v321, %v322
  %v324 = vsel %vm227, %v295, 0.0
  %v325 = vadd.f32 %v323, %v324
  %v326 = vsel %vm227, %v296, 0.0
  %v327 = vadd.f32 %v325, %v326
  %v328 = vrot.slane %v327, 4
  %v329 = vadd.f32 %v327, %v328
  %v330 = vrot.slane %v329, 2
  %v331 = vadd.f32 %v329, %v330
  %v332 = vrot.slane %v331, 1
  %v333 = vadd.f32 %v331, %v332
  %vm334 = vcmask 1040384
  %v335 = vsel %vm334, %v280, %v333
  %vm336 = vcmask 1041408
  %v337 = vsel %vm336, %v335, 0.0
  %338 = vst.msk [vmem:[%s3] sm:$0xff] %vm227, %v337
  // Predicated region
  $region10: #{bottleneck_forward.4} parent=0 // pred_check
    _
  $region11: #{bottleneck_forward.4} parent=0 // pred_check_branch
    %340 = sbr.rel (0) target = $region13
  $region12: #{bottleneck_forward.4} parent=0 // pred_region
    _
  $region13: #{bottleneck_forward.4} parent=0 // pred_fallthru
    _
  // Predicated region
  $region14: #{bottleneck_forward.4} parent=0 // pred_check
    _
  $region15: #{bottleneck_forward.4} parent=0 // pred_check_branch
    %342 = sbr.rel (0) target = $region17
  $region16: #{bottleneck_forward.4} parent=0 // pred_region
    _
  $region17: #{bottleneck_forward.4} parent=0 // pred_fallthru
    _
  // Predicated region
  $region18: #{bottleneck_forward.4} parent=0 // pred_check
    _
  $region19: #{bottleneck_forward.4} parent=0 // pred_check_branch
    %344 = sbr.rel (0) target = $region21
  $region20: #{bottleneck_forward.4} parent=0 // pred_region
    _
  $region21: #{bottleneck_forward.4} parent=0 // pred_fallthru
    _
  // Predicated region
  $region22: #{bottleneck_forward.4} parent=0 // pred_check
    _
  $region23: #{bottleneck_forward.4} parent=0 // pred_check_branch
    %346 = sbr.rel (0) target = $region25
  $region24: #{bottleneck_forward.4} parent=0 // pred_region
    _
  $region25: #{bottleneck_forward.4} parent=0 // pred_fallthru
    _

// kernel: bottleneck_forward.7
$region0: #{bottleneck_forward.7}
  #allocation0 [shape = 'u32[]', space=smem, size = 0x4, offset = 0x4, fixed_abs, tag = 'smem constant byte address 0x4 - core index']
  #allocation1 [shape = 'u32[144,128]{1,0:T(1,128)}', space=vmem, size = 0x12000, scoped, tag = 'internal scratch']
  %s0 = inlined_call_operand.vmem [shape: f32[128,32], index: 0, kind: input, shape index: {}]
  %s1 = inlined_call_operand.vmem [shape: f32[128,32], index: 1, kind: input, shape index: {}]
  %s2 = inlined_call_operand.vmem [shape: f32[1,32], index: 2, kind: input, shape index: {}]
  %s3 = inlined_call_operand.vmem [shape: f32[1,32], index: 3, kind: input, shape index: {}]
  %s4 = inlined_call_operand.hbm [shape: f32[128,32], index: 4, kind: output, shape index: {}]
  %s5 = sld [smem:[#allocation0]]
  $region26: #{bottleneck_forward.7} parent=0
    _
  %s7 = ssub.s32 1, %s5
  %s8 = scalar_select 0, %s7, %s5
  $region1: #{bottleneck_forward.7} parent=0
    #allocation2 [shape = 'u8[65536]{0}', space=vmem, size = 0x10000, scoped, tag = 'output window, operand 0, single buffered']
    #allocation3 [shape = 's32[1]{0}', space=sflag, size = 0x4, scoped, tag = 'scoped memory for bottleneck_forward.7']
    %9 = vsyncpa [#allocation3], 0
    // Predicated region
    $region2: #{bottleneck_forward.7} parent=1 // pred_check
      _
    $region3: #{bottleneck_forward.7} parent=1 // pred_check_branch
      %11 = sbr.rel (0) target = $region5
    $region4: #{bottleneck_forward.7} parent=1 // pred_region
      _
    $region5: #{bottleneck_forward.7} parent=1 // pred_fallthru
      _
    // Predicated region
    $region6: #{bottleneck_forward.7} parent=1 // pred_check
      _
    $region7: #{bottleneck_forward.7} parent=1 // pred_check_branch
      %13 = sbr.rel (0) target = $region9
    $region8: #{bottleneck_forward.7} parent=1 // pred_region
      _
    $region9: #{bottleneck_forward.7} parent=1 // pred_fallthru
      _
    // Predicated region
    $region10: #{bottleneck_forward.7} parent=1 // pred_check
      _
    $region11: #{bottleneck_forward.7} parent=1 // pred_check_branch
      %15 = sbr.rel (0) target = $region13
    $region12: #{bottleneck_forward.7} parent=1 // pred_region
      _
    $region13: #{bottleneck_forward.7} parent=1 // pred_fallthru
      _
    // Predicated region
    $region14: #{bottleneck_forward.7} parent=1 // pred_check
      _
    $region15: #{bottleneck_forward.7} parent=1 // pred_check_branch
      %17 = sbr.rel (0) target = $region17
    $region16: #{bottleneck_forward.7} parent=1 // pred_region
      _
    $region17: #{bottleneck_forward.7} parent=1 // pred_fallthru
      _
    %v18 = vld [vmem:[%s0] sm:$0xff]
    %v19 = vld [vmem:[%s0 + $0x8] sm:$0xff]
    %v20 = vld [vmem:[%s0 + $0x10] sm:$0xff]
    %v21 = vld [vmem:[%s0 + $0x18] sm:$0xff]
    %v22 = vld [vmem:[%s0 + $0x20] sm:$0xff]
    %v23 = vld [vmem:[%s0 + $0x28] sm:$0xff]
    %v24 = vld [vmem:[%s0 + $0x30] sm:$0xff]
    %v25 = vld [vmem:[%s0 + $0x38] sm:$0xff]
    %v26 = vld [vmem:[%s0 + $0x40] sm:$0xff]
    %v27 = vld [vmem:[%s0 + $0x48] sm:$0xff]
    %v28 = vld [vmem:[%s0 + $0x50] sm:$0xff]
    %v29 = vld [vmem:[%s0 + $0x58] sm:$0xff]
    %v30 = vld [vmem:[%s0 + $0x60] sm:$0xff]
    %v31 = vld [vmem:[%s0 + $0x68] sm:$0xff]
    %v32 = vld [vmem:[%s0 + $0x70] sm:$0xff]
    %v33 = vld [vmem:[%s0 + $0x78] sm:$0xff]
    %v34 = vld [vmem:[%s1] sm:$0xff]
    %v35 = vld [vmem:[%s1 + $0x8] sm:$0xff]
    %v36 = vld [vmem:[%s1 + $0x10] sm:$0xff]
    %v37 = vld [vmem:[%s1 + $0x18] sm:$0xff]
    %v38 = vld [vmem:[%s1 + $0x20] sm:$0xff]
    %v39 = vld [vmem:[%s1 + $0x28] sm:$0xff]
    %v40 = vld [vmem:[%s1 + $0x30] sm:$0xff]
    %v41 = vld [vmem:[%s1 + $0x38] sm:$0xff]
    %v42 = vld [vmem:[%s1 + $0x40] sm:$0xff]
    %v43 = vld [vmem:[%s1 + $0x48] sm:$0xff]
    %v44 = vld [vmem:[%s1 + $0x50] sm:$0xff]
    %v45 = vld [vmem:[%s1 + $0x58] sm:$0xff]
    %v46 = vld [vmem:[%s1 + $0x60] sm:$0xff]
    %v47 = vld [vmem:[%s1 + $0x68] sm:$0xff]
    %v48 = vld [vmem:[%s1 + $0x70] sm:$0xff]
    %v49 = vld [vmem:[%s1 + $0x78] sm:$0xff]
    %v50 = vld [vmem:[%s2] sm:$0x1]
    %v52 = vlaneseq
    %v53 = vshrl.u32 %v52, 7
    %v54 = vsub.s32 0, %v53
    %v55 = vrot.slane %v50, %v54
    %v57 = vmul.f32 %v18, %v55
    %v58 = vmul.f32 %v19, %v55
    %v59 = vmul.f32 %v20, %v55
    %v60 = vmul.f32 %v21, %v55
    %v61 = vmul.f32 %v22, %v55
    %v62 = vmul.f32 %v23, %v55
    %v63 = vmul.f32 %v24, %v55
    %v64 = vmul.f32 %v25, %v55
    %v65 = vmul.f32 %v26, %v55
    %v66 = vmul.f32 %v27, %v55
    %v67 = vmul.f32 %v28, %v55
    %v68 = vmul.f32 %v29, %v55
    %v69 = vmul.f32 %v30, %v55
    %v70 = vmul.f32 %v31, %v55
    %v71 = vmul.f32 %v32, %v55
    %v72 = vmul.f32 %v33, %v55
    %v73 = vld [vmem:[%s3] sm:$0x1]
    %v75 = vlaneseq
    %v76 = vshrl.u32 %v75, 7
    %v77 = vsub.s32 0, %v76
    %v78 = vrot.slane %v73, %v77
    %v80 = vadd.f32 %v57, %v78
    %v81 = vadd.f32 %v58, %v78
    %v82 = vadd.f32 %v59, %v78
    %v83 = vadd.f32 %v60, %v78
    %v84 = vadd.f32 %v61, %v78
    %v85 = vadd.f32 %v62, %v78
    %v86 = vadd.f32 %v63, %v78
    %v87 = vadd.f32 %v64, %v78
    %v88 = vadd.f32 %v65, %v78
    %v89 = vadd.f32 %v66, %v78
    %v90 = vadd.f32 %v67, %v78
    %v91 = vadd.f32 %v68, %v78
    %v92 = vadd.f32 %v69, %v78
    %v93 = vadd.f32 %v70, %v78
    %v94 = vadd.f32 %v71, %v78
    %v95 = vadd.f32 %v72, %v78
    %v96 = vadd.f32 %v80, %v34
    %v97 = vadd.f32 %v81, %v35
    %v98 = vadd.f32 %v82, %v36
    %v99 = vadd.f32 %v83, %v37
    %v100 = vadd.f32 %v84, %v38
    %v101 = vadd.f32 %v85, %v39
    %v102 = vadd.f32 %v86, %v40
    %v103 = vadd.f32 %v87, %v41
    %v104 = vadd.f32 %v88, %v42
    %v105 = vadd.f32 %v89, %v43
    %v106 = vadd.f32 %v90, %v44
    %v107 = vadd.f32 %v91, %v45
    %v108 = vadd.f32 %v92, %v46
    %v109 = vadd.f32 %v93, %v47
    %v110 = vadd.f32 %v94, %v48
    %v111 = vadd.f32 %v95, %v49
    %v112 = vmax.f32 %v96, 0.0
    %v113 = vmax.f32 %v97, 0.0
    %v114 = vmax.f32 %v98, 0.0
    %v115 = vmax.f32 %v99, 0.0
    %v116 = vmax.f32 %v100, 0.0
    %v117 = vmax.f32 %v101, 0.0
    %v118 = vmax.f32 %v102, 0.0
    %v119 = vmax.f32 %v103, 0.0
    %v120 = vmax.f32 %v104, 0.0
    %v121 = vmax.f32 %v105, 0.0
    %v122 = vmax.f32 %v106, 0.0
    %v123 = vmax.f32 %v107, 0.0
    %v124 = vmax.f32 %v108, 0.0
    %v125 = vmax.f32 %v109, 0.0
    %v126 = vmax.f32 %v110, 0.0
    %v127 = vmax.f32 %v111, 0.0
    %vm128 = vcmask 261120
    %129 = vst.msk [vmem:[#allocation2] sm:$0xff] %vm128, %v112
    %130 = vst.msk [vmem:[#allocation2 + $0x8] sm:$0xff] %vm128, %v113
    %131 = vst.msk [vmem:[#allocation2 + $0x10] sm:$0xff] %vm128, %v114
    %132 = vst.msk [vmem:[#allocation2 + $0x18] sm:$0xff] %vm128, %v115
    %133 = vst.msk [vmem:[#allocation2 + $0x20] sm:$0xff] %vm128, %v116
    %134 = vst.msk [vmem:[#allocation2 + $0x28] sm:$0xff] %vm128, %v117
    %135 = vst.msk [vmem:[#allocation2 + $0x30] sm:$0xff] %vm128, %v118
    %136 = vst.msk [vmem:[#allocation2 + $0x38] sm:$0xff] %vm128, %v119
    %137 = vst.msk [vmem:[#allocation2 + $0x40] sm:$0xff] %vm128, %v120
    %138 = vst.msk [vmem:[#allocation2 + $0x48] sm:$0xff] %vm128, %v121
    %139 = vst.msk [vmem:[#allocation2 + $0x50] sm:$0xff] %vm128, %v122
    %140 = vst.msk [vmem:[#allocation2 + $0x58] sm:$0xff] %vm128, %v123
    %141 = vst.msk [vmem:[#allocation2 + $0x60] sm:$0xff] %vm128, %v124
    %142 = vst.msk [vmem:[#allocation2 + $0x68] sm:$0xff] %vm128, %v125
    %143 = vst.msk [vmem:[#allocation2 + $0x70] sm:$0xff] %vm128, %v126
    %144 = vst.msk [vmem:[#allocation2 + $0x78] sm:$0xff] %vm128, %v127
    // Predicated region
    $region18: #{bottleneck_forward.7} parent=1 // pred_check
      _
    $region19: #{bottleneck_forward.7} parent=1 // pred_check_branch
      %146 = sbr.rel (0) target = $region21
    $region20: #{bottleneck_forward.7} parent=1 // pred_region
      %s148 = ssub.s32 2048, 2048
      %149 = vsyncadd [#allocation3], %s148
      %s150 = sshll.u32 [#allocation2], 4
      %s151 = int_to_ptr.vmem [resolvable:$true] %s150
      %156 = dma.vmem_to_hbm [thread:$0]  %s151, 2048, %s4, [#allocation3], 128, 128, 8
    $region21: #{bottleneck_forward.7} parent=1 // pred_fallthru
      _
    // Predicated region
    $region22: #{bottleneck_forward.7} parent=1 // pred_check
      _
    $region23: #{bottleneck_forward.7} parent=1 // pred_check_branch
      %158 = sbr.rel (0) target = $region25
    $region24: #{bottleneck_forward.7} parent=1 // pred_region
      %159 = dma.done [#allocation3], 2048
    $region25: #{bottleneck_forward.7} parent=1 // pred_fallthru
      _
    %160 = vsyncpa [#allocation3], 1

// kernel: bottleneck_forward.6
$region0: #{bottleneck_forward.6}
  #allocation0 [shape = 'u32[]', space=smem, size = 0x4, offset = 0x4, fixed_abs, tag = 'smem constant byte address 0x4 - core index']
  #allocation1 [shape = 'u32[144,128]{1,0:T(1,128)}', space=vmem, size = 0x12000, scoped, tag = 'internal scratch']
  %s0 = inlined_call_operand.vmem [shape: f32[128,8], index: 0, kind: input, shape index: {}]
  %s1 = inlined_call_operand.vmem [shape: f32[8,32], index: 1, kind: input, shape index: {}]
  %s2 = inlined_call_operand.vmem [shape: f32[1,8], index: 2, kind: input, shape index: {}]
  %s3 = inlined_call_operand.vmem [shape: f32[1,8], index: 3, kind: input, shape index: {}]
  %s4 = inlined_call_operand.vmem [shape: f32[128,32], index: 4, kind: output, shape index: {0}]
  %s5 = inlined_call_operand.vmem [shape: f32[1,8,32], index: 5, kind: output, shape index: {1}]
  %6 = xla_tuple %s4, %s5
  %s7 = sld [smem:[#allocation0]]
  $region34: #{bottleneck_forward.6} parent=0
    _
  %s9 = ssub.s32 1, %s7
  %s10 = scalar_select 0, %s9, %s7
  // Predicated region
  $region2: #{bottleneck_forward.6} parent=0 // pred_check
    _
  $region3: #{bottleneck_forward.6} parent=0 // pred_check_branch
    %12 = sbr.rel (0) target = $region5
  $region4: #{bottleneck_forward.6} parent=0 // pred_region
    _
  $region5: #{bottleneck_forward.6} parent=0 // pred_fallthru
    _
  // Predicated region
  $region6: #{bottleneck_forward.6} parent=0 // pred_check
    _
  $region7: #{bottleneck_forward.6} parent=0 // pred_check_branch
    %14 = sbr.rel (0) target = $region9
  $region8: #{bottleneck_forward.6} parent=0 // pred_region
    _
  $region9: #{bottleneck_forward.6} parent=0 // pred_fallthru
    _
  // Predicated region
  $region10: #{bottleneck_forward.6} parent=0 // pred_check
    _
  $region11: #{bottleneck_forward.6} parent=0 // pred_check_branch
    %16 = sbr.rel (0) target = $region13
  $region12: #{bottleneck_forward.6} parent=0 // pred_region
    _
  $region13: #{bottleneck_forward.6} parent=0 // pred_fallthru
    _
  // Predicated region
  $region14: #{bottleneck_forward.6} parent=0 // pred_check
    _
  $region15: #{bottleneck_forward.6} parent=0 // pred_check_branch
    %18 = sbr.rel (0) target = $region17
  $region16: #{bottleneck_forward.6} parent=0 // pred_region
    _
  $region17: #{bottleneck_forward.6} parent=0 // pred_fallthru
    _
  %v19 = vld [vmem:[%s0] sm:$0xff]
  %v20 = vld [vmem:[%s0 + $0x8] sm:$0xff]
  %v21 = vld [vmem:[%s0 + $0x10] sm:$0xff]
  %v22 = vld [vmem:[%s0 + $0x18] sm:$0xff]
  %v23 = vld [vmem:[%s0 + $0x20] sm:$0xff]
  %v24 = vld [vmem:[%s0 + $0x28] sm:$0xff]
  %v25 = vld [vmem:[%s0 + $0x30] sm:$0xff]
  %v26 = vld [vmem:[%s0 + $0x38] sm:$0xff]
  %v27 = vld [vmem:[%s0 + $0x40] sm:$0xff]
  %v28 = vld [vmem:[%s0 + $0x48] sm:$0xff]
  %v29 = vld [vmem:[%s0 + $0x50] sm:$0xff]
  %v30 = vld [vmem:[%s0 + $0x58] sm:$0xff]
  %v31 = vld [vmem:[%s0 + $0x60] sm:$0xff]
  %v32 = vld [vmem:[%s0 + $0x68] sm:$0xff]
  %v33 = vld [vmem:[%s0 + $0x70] sm:$0xff]
  %v34 = vld [vmem:[%s0 + $0x78] sm:$0xff]
  %v35 = vld [vmem:[%s2] sm:$0x1]
  %v37 = vlaneseq
  %v38 = vshrl.u32 %v37, 7
  %v39 = vsub.s32 0, %v38
  %v40 = vrot.slane %v35, %v39
  %v42 = vmul.f32 %v19, %v40
  %v43 = vmul.f32 %v20, %v40
  %v44 = vmul.f32 %v21, %v40
  %v45 = vmul.f32 %v22, %v40
  %v46 = vmul.f32 %v23, %v40
  %v47 = vmul.f32 %v24, %v40
  %v48 = vmul.f32 %v25, %v40
  %v49 = vmul.f32 %v26, %v40
  %v50 = vmul.f32 %v27, %v40
  %v51 = vmul.f32 %v28, %v40
  %v52 = vmul.f32 %v29, %v40
  %v53 = vmul.f32 %v30, %v40
  %v54 = vmul.f32 %v31, %v40
  %v55 = vmul.f32 %v32, %v40
  %v56 = vmul.f32 %v33, %v40
  %v57 = vmul.f32 %v34, %v40
  %v58 = vld [vmem:[%s3] sm:$0x1]
  %v60 = vlaneseq
  %v61 = vshrl.u32 %v60, 7
  %v62 = vsub.s32 0, %v61
  %v63 = vrot.slane %v58, %v62
  %v65 = vadd.f32 %v42, %v63
  %v66 = vadd.f32 %v43, %v63
  %v67 = vadd.f32 %v44, %v63
  %v68 = vadd.f32 %v45, %v63
  %v69 = vadd.f32 %v46, %v63
  %v70 = vadd.f32 %v47, %v63
  %v71 = vadd.f32 %v48, %v63
  %v72 = vadd.f32 %v49, %v63
  %v73 = vadd.f32 %v50, %v63
  %v74 = vadd.f32 %v51, %v63
  %v75 = vadd.f32 %v52, %v63
  %v76 = vadd.f32 %v53, %v63
  %v77 = vadd.f32 %v54, %v63
  %v78 = vadd.f32 %v55, %v63
  %v79 = vadd.f32 %v56, %v63
  %v80 = vadd.f32 %v57, %v63
  %v81 = vmax.f32 %v65, 0.0
  %v82 = vmax.f32 %v66, 0.0
  %v83 = vmax.f32 %v67, 0.0
  %v84 = vmax.f32 %v68, 0.0
  %v85 = vmax.f32 %v69, 0.0
  %v86 = vmax.f32 %v70, 0.0
  %v87 = vmax.f32 %v71, 0.0
  %v88 = vmax.f32 %v72, 0.0
  %v89 = vmax.f32 %v73, 0.0
  %v90 = vmax.f32 %v74, 0.0
  %v91 = vmax.f32 %v75, 0.0
  %v92 = vmax.f32 %v76, 0.0
  %v93 = vmax.f32 %v77, 0.0
  %v94 = vmax.f32 %v78, 0.0
  %v95 = vmax.f32 %v79, 0.0
  %v96 = vmax.f32 %v80, 0.0
  %v97 = vld [vmem:[%s1] sm:$0xff]
  %vm98 = vcmask 64512
  %v100 = vsel %vm98, %v81, 0
  %v103 = vsel %vm98, %v82, 0
  %v106 = vsel %vm98, %v83, 0
  %v109 = vsel %vm98, %v84, 0
  %v112 = vsel %vm98, %v85, 0
  %v115 = vsel %vm98, %v86, 0
  %v118 = vsel %vm98, %v87, 0
  %v121 = vsel %vm98, %v88, 0
  %v124 = vsel %vm98, %v89, 0
  %v127 = vsel %vm98, %v90, 0
  %v130 = vsel %vm98, %v91, 0
  %v133 = vsel %vm98, %v92, 0
  %v136 = vsel %vm98, %v93, 0
  %v139 = vsel %vm98, %v94, 0
  %v142 = vsel %vm98, %v95, 0
  %v145 = vsel %vm98, %v96, 0
  %147 = vmatprep.subr.mxu0 0.0
  %148 = vmatpush1.msra.mxu0 %v97
  %149 = vmatprep.subr.mxu0 0.0
  %150 = vmatpush1.msra.mxu0 0.0
  %151 = vmatprep.subr.mxu0 0.0
  %152 = vmatpush1.msra.mxu0 0.0
  %153 = vmatprep.subr.mxu0 0.0
  %154 = vmatpush1.msra.mxu0 0.0
  %155 = vmatprep.subr.mxu0 0.0
  %156 = vmatpush1.msra.mxu0 0.0
  %157 = vmatprep.subr.mxu0 0.0
  %158 = vmatpush1.msra.mxu0 0.0
  %159 = vmatprep.subr.mxu0 0.0
  %160 = vmatpush1.msra.mxu0 0.0
  %161 = vmatprep.subr.mxu0 0.0
  %162 = vmatpush1.msra.mxu0 0.0
  %163 = vmatprep.subr.mxu0 0.0
  %164 = vmatpush1.msra.mxu0 0.0
  %165 = vmatprep.subr.mxu0 0.0
  %166 = vmatpush1.msra.mxu0 0.0
  %167 = vmatprep.subr.mxu0 0.0
  %168 = vmatpush1.msra.mxu0 0.0
  %169 = vmatprep.subr.mxu0 0.0
  %170 = vmatpush1.msra.mxu0 0.0
  %171 = vmatprep.subr.mxu0 0.0
  %172 = vmatpush1.msra.mxu0 0.0
  %173 = vmatprep.subr.mxu0 0.0
  %174 = vmatpush1.msra.mxu0 0.0
  %175 = vmatprep.subr.mxu0 0.0
  %176 = vmatpush1.msra.mxu0 0.0
  %177 = vmatprep.subr.mxu0 0.0
  %178 = vmatpush1.msra.mxu0 0.0
  %179 = vmatprep.subr.mxu0 0.0
  %180 = vmatpush1.msra.mxu0 0.0
  %181 = vmatprep.subr.mxu0 0.0
  %182 = vmatpush1.msra.mxu0 0.0
  %183 = vmatprep.subr.mxu0 0.0
  %184 = vmatpush1.msra.mxu0 0.0
  %185 = vmatprep.subr.mxu0 0.0
  %186 = vmatpush1.msra.mxu0 0.0
  %187 = vmatprep.subr.mxu0 0.0
  %188 = vmatpush1.msra.mxu0 0.0
  %189 = vmatprep.subr.mxu0 0.0
  %190 = vmatpush1.msra.mxu0 0.0
  %191 = vmatprep.subr.mxu0 0.0
  %192 = vmatpush1.msra.mxu0 0.0
  %193 = vmatprep.subr.mxu0 0.0
  %194 = vmatpush1.msra.mxu0 0.0
  %195 = vmatprep.subr.mxu0 0.0
  %196 = vmatpush1.msra.mxu0 0.0
  %197 = vmatprep.subr.mxu0 0.0
  %198 = vmatpush1.msra.mxu0 0.0
  %199 = vmatprep.subr.mxu0 0.0
  %200 = vmatpush1.msra.mxu0 0.0
  %201 = vmatprep.subr.mxu0 0.0
  %202 = vmatpush1.msra.mxu0 0.0
  %203 = vmatprep.subr.mxu0 0.0
  %204 = vmatpush1.msra.mxu0 0.0
  %205 = vmatprep.subr.mxu0 0.0
  %206 = vmatpush1.msra.mxu0 0.0
  %207 = vmatprep.subr.mxu0 0.0
  %208 = vmatpush1.msra.mxu0 0.0
  %209 = vmatprep.subr.mxu0 0.0
  %210 = vmatpush1.msra.mxu0 0.0
  %211 = vmatprep.mubr.f32.mxu0 0.0
  %212 = vmatmul.mubr.f32.gmra.mrb[0].mxu0 %v100
  %v213 = vpop.f32.mrb[0].mxu0
  %v214 = vadd.f32 0.0, %v213
  %v215 = vpop.f32.mrb[0].mxu0
  %216 = vmatprep.mubr.f32.mxu0 0.0
  %217 = vmatmul.mubr.f32.gmra.mrb[0].mxu0 %v103
  %v218 = vpop.f32.mrb[0].mxu0
  %v219 = vadd.f32 0.0, %v218
  %v220 = vpop.f32.mrb[0].mxu0
  %221 = vmatprep.mubr.f32.mxu0 0.0
  %222 = vmatmul.mubr.f32.gmra.mrb[0].mxu0 %v106
  %v223 = vpop.f32.mrb[0].mxu0
  %v224 = vadd.f32 0.0, %v223
  %v225 = vpop.f32.mrb[0].mxu0
  %226 = vmatprep.mubr.f32.mxu0 0.0
  %227 = vmatmul.mubr.f32.gmra.mrb[0].mxu0 %v109
  %v228 = vpop.f32.mrb[0].mxu0
  %v229 = vadd.f32 0.0, %v228
  %v230 = vpop.f32.mrb[0].mxu0
  %231 = vmatprep.mubr.f32.mxu0 0.0
  %232 = vmatmul.mubr.f32.gmra.mrb[0].mxu0 %v112
  %v233 = vpop.f32.mrb[0].mxu0
  %v234 = vadd.f32 0.0, %v233
  %v235 = vpop.f32.mrb[0].mxu0
  %236 = vmatprep.mubr.f32.mxu0 0.0
  %237 = vmatmul.mubr.f32.gmra.mrb[0].mxu0 %v115
  %v238 = vpop.f32.mrb[0].mxu0
  %v239 = vadd.f32 0.0, %v238
  %v240 = vpop.f32.mrb[0].mxu0
  %241 = vmatprep.mubr.f32.mxu0 0.0
  %242 = vmatmul.mubr.f32.gmra.mrb[0].mxu0 %v118
  %v243 = vpop.f32.mrb[0].mxu0
  %v244 = vadd.f32 0.0, %v243
  %v245 = vpop.f32.mrb[0].mxu0
  %246 = vmatprep.mubr.f32.mxu0 0.0
  %247 = vmatmul.mubr.f32.gmra.mrb[0].mxu0 %v121
  %v248 = vpop.f32.mrb[0].mxu0
  %v249 = vadd.f32 0.0, %v248
  %v250 = vpop.f32.mrb[0].mxu0
  %251 = vmatprep.mubr.f32.mxu0 0.0
  %252 = vmatmul.mubr.f32.gmra.mrb[0].mxu0 %v124
  %v253 = vpop.f32.mrb[0].mxu0
  %v254 = vadd.f32 0.0, %v253
  %v255 = vpop.f32.mrb[0].mxu0
  %256 = vmatprep.mubr.f32.mxu0 0.0
  %257 = vmatmul.mubr.f32.gmra.mrb[0].mxu0 %v127
  %v258 = vpop.f32.mrb[0].mxu0
  %v259 = vadd.f32 0.0, %v258
  %v260 = vpop.f32.mrb[0].mxu0
  %261 = vmatprep.mubr.f32.mxu0 0.0
  %262 = vmatmul.mubr.f32.gmra.mrb[0].mxu0 %v130
  %v263 = vpop.f32.mrb[0].mxu0
  %v264 = vadd.f32 0.0, %v263
  %v265 = vpop.f32.mrb[0].mxu0
  %266 = vmatprep.mubr.f32.mxu0 0.0
  %267 = vmatmul.mubr.f32.gmra.mrb[0].mxu0 %v133
  %v268 = vpop.f32.mrb[0].mxu0
  %v269 = vadd.f32 0.0, %v268
  %v270 = vpop.f32.mrb[0].mxu0
  %271 = vmatprep.mubr.f32.mxu0 0.0
  %272 = vmatmul.mubr.f32.gmra.mrb[0].mxu0 %v136
  %v273 = vpop.f32.mrb[0].mxu0
  %v274 = vadd.f32 0.0, %v273
  %v275 = vpop.f32.mrb[0].mxu0
  %276 = vmatprep.mubr.f32.mxu0 0.0
  %277 = vmatmul.mubr.f32.gmra.mrb[0].mxu0 %v139
  %v278 = vpop.f32.mrb[0].mxu0
  %v279 = vadd.f32 0.0, %v278
  %v280 = vpop.f32.mrb[0].mxu0
  %281 = vmatprep.mubr.f32.mxu0 0.0
  %282 = vmatmul.mubr.f32.gmra.mrb[0].mxu0 %v142
  %v283 = vpop.f32.mrb[0].mxu0
  %v284 = vadd.f32 0.0, %v283
  %v285 = vpop.f32.mrb[0].mxu0
  %286 = vmatprep.mubr.f32.mxu0 0.0
  %287 = vmatmul.mubr.f32.gmra.mrb[0].mxu0 %v145
  %v288 = vpop.f32.mrb[0].mxu0
  %v289 = vadd.f32 0.0, %v288
  %v290 = vpop.f32.mrb[0].mxu0
  %291 = vdwg.mxu0
  %vm292 = vcmask 261120
  %293 = vst.msk [vmem:[%s4] sm:$0xff] %vm292, %v214
  %294 = vst.msk [vmem:[%s4 + $0x8] sm:$0xff] %vm292, %v219
  %295 = vst.msk [vmem:[%s4 + $0x10] sm:$0xff] %vm292, %v224
  %296 = vst.msk [vmem:[%s4 + $0x18] sm:$0xff] %vm292, %v229
  %297 = vst.msk [vmem:[%s4 + $0x20] sm:$0xff] %vm292, %v234
  %298 = vst.msk [vmem:[%s4 + $0x28] sm:$0xff] %vm292, %v239
  %299 = vst.msk [vmem:[%s4 + $0x30] sm:$0xff] %vm292, %v244
  %300 = vst.msk [vmem:[%s4 + $0x38] sm:$0xff] %vm292, %v249
  %301 = vst.msk [vmem:[%s4 + $0x40] sm:$0xff] %vm292, %v254
  %302 = vst.msk [vmem:[%s4 + $0x48] sm:$0xff] %vm292, %v259
  %303 = vst.msk [vmem:[%s4 + $0x50] sm:$0xff] %vm292, %v264
  %304 = vst.msk [vmem:[%s4 + $0x58] sm:$0xff] %vm292, %v269
  %305 = vst.msk [vmem:[%s4 + $0x60] sm:$0xff] %vm292, %v274
  %306 = vst.msk [vmem:[%s4 + $0x68] sm:$0xff] %vm292, %v279
  %307 = vst.msk [vmem:[%s4 + $0x70] sm:$0xff] %vm292, %v284
  %308 = vst.msk [vmem:[%s4 + $0x78] sm:$0xff] %vm292, %v289
  %v309 = vsel %vm292, %v214, 0.0
  %v310 = vsel %vm292, %v219, 0.0
  %v311 = vadd.f32 %v309, %v310
  %v312 = vsel %vm292, %v224, 0.0
  %v313 = vadd.f32 %v311, %v312
  %v314 = vsel %vm292, %v229, 0.0
  %v315 = vadd.f32 %v313, %v314
  %v316 = vsel %vm292, %v234, 0.0
  %v317 = vadd.f32 %v315, %v316
  %v318 = vsel %vm292, %v239, 0.0
  %v319 = vadd.f32 %v317, %v318
  %v320 = vsel %vm292, %v244, 0.0
  %v321 = vadd.f32 %v319, %v320
  %v322 = vsel %vm292, %v249, 0.0
  %v323 = vadd.f32 %v321, %v322
  %v324 = vsel %vm292, %v254, 0.0
  %v325 = vadd.f32 %v323, %v324
  %v326 = vsel %vm292, %v259, 0.0
  %v327 = vadd.f32 %v325, %v326
  %v328 = vsel %vm292, %v264, 0.0
  %v329 = vadd.f32 %v327, %v328
  %v330 = vsel %vm292, %v269, 0.0
  %v331 = vadd.f32 %v329, %v330
  %v332 = vsel %vm292, %v274, 0.0
  %v333 = vadd.f32 %v331, %v332
  %v334 = vsel %vm292, %v279, 0.0
  %v335 = vadd.f32 %v333, %v334
  %v336 = vsel %vm292, %v284, 0.0
  %v337 = vadd.f32 %v335, %v336
  %v338 = vsel %vm292, %v289, 0.0
  %v339 = vadd.f32 %v337, %v338
  %v340 = vrot.slane %v339, 4
  %v341 = vadd.f32 %v339, %v340
  %v342 = vrot.slane %v341, 2
  %v343 = vadd.f32 %v341, %v342
  %v344 = vrot.slane %v343, 1
  %v345 = vadd.f32 %v343, %v344
  %v346 = vmul.f32 %v214, %v214
  %v347 = vmul.f32 %v219, %v219
  %v348 = vmul.f32 %v224, %v224
  %v349 = vmul.f32 %v229, %v229
  %v350 = vmul.f32 %v234, %v234
  %v351 = vmul.f32 %v239, %v239
  %v352 = vmul.f32 %v244, %v244
  %v353 = vmul.f32 %v249, %v249
  %v354 = vmul.f32 %v254, %v254
  %v355 = vmul.f32 %v259, %v259
  %v356 = vmul.f32 %v264, %v264
  %v357 = vmul.f32 %v269, %v269
  %v358 = vmul.f32 %v274, %v274
  %v359 = vmul.f32 %v279, %v279
  %v360 = vmul.f32 %v284, %v284
  %v361 = vmul.f32 %v289, %v289
  %v362 = vsel %vm292, %v346, 0.0
  %v363 = vsel %vm292, %v347, 0.0
  %v364 = vadd.f32 %v362, %v363
  %v365 = vsel %vm292, %v348, 0.0
  %v366 = vadd.f32 %v364, %v365
  %v367 = vsel %vm292, %v349, 0.0
  %v368 = vadd.f32 %v366, %v367
  %v369 = vsel %vm292, %v350, 0.0
  %v370 = vadd.f32 %v368, %v369
  %v371 = vsel %vm292, %v351, 0.0
  %v372 = vadd.f32 %v370, %v371
  %v373 = vsel %vm292, %v352, 0.0
  %v374 = vadd.f32 %v372, %v373
  %v375 = vsel %vm292, %v353, 0.0
  %v376 = vadd.f32 %v374, %v375
  %v377 = vsel %vm292, %v354, 0.0
  %v378 = vadd.f32 %v376, %v377
  %v379 = vsel %vm292, %v355, 0.0
  %v380 = vadd.f32 %v378, %v379
  %v381 = vsel %vm292, %v356, 0.0
  %v382 = vadd.f32 %v380, %v381
  %v383 = vsel %vm292, %v357, 0.0
  %v384 = vadd.f32 %v382, %v383
  %v385 = vsel %vm292, %v358, 0.0
  %v386 = vadd.f32 %v384, %v385
  %v387 = vsel %vm292, %v359, 0.0
  %v388 = vadd.f32 %v386, %v387
  %v389 = vsel %vm292, %v360, 0.0
  %v390 = vadd.f32 %v388, %v389
  %v391 = vsel %vm292, %v361, 0.0
  %v392 = vadd.f32 %v390, %v391
  %v393 = vrot.slane %v392, 4
  %v394 = vadd.f32 %v392, %v393
  %v395 = vrot.slane %v394, 2
  %v396 = vadd.f32 %v394, %v395
  %v397 = vrot.slane %v396, 1
  %v398 = vadd.f32 %v396, %v397
  %vm399 = vcmask 1040384
  %v400 = vsel %vm399, %v345, %v398
  %vm401 = vcmask 1041408
  %v402 = vsel %vm401, %v400, 0.0
  %403 = vst.msk [vmem:[%s5] sm:$0xff] %vm292, %v402
  // Predicated region
  $region18: #{bottleneck_forward.6} parent=0 // pred_check
    _
  $region19: #{bottleneck_forward.6} parent=0 // pred_check_branch
    %405 = sbr.rel (0) target = $region21
  $region20: #{bottleneck_forward.6} parent=0 // pred_region
    _
  $region21: #{bottleneck_forward.6} parent=0 // pred_fallthru
    _
  // Predicated region
  $region22: #{bottleneck_forward.6} parent=0 // pred_check
    _
  $region23: #{bottleneck_forward.6} parent=0 // pred_check_branch
    %407 = sbr.rel (0) target = $region25
  $region24: #{bottleneck_forward.6} parent=0 // pred_region
    _
  $region25: #{bottleneck_forward.6} parent=0 // pred_fallthru
    _
  // Predicated region
  $region26: #{bottleneck_forward.6} parent=0 // pred_check
    _
  $region27: #{bottleneck_forward.6} parent=0 // pred_check_branch
    %409 = sbr.rel (0) target = $region29
  $region28: #{bottleneck_forward.6} parent=0 // pred_region
    _
  $region29: #{bottleneck_forward.6} parent=0 // pred_fallthru
    _
  // Predicated region
  $region30: #{bottleneck_forward.6} parent=0 // pred_check
    _
  $region31: #{bottleneck_forward.6} parent=0 // pred_check_branch
    %411 = sbr.rel (0) target = $region33
  $region32: #{bottleneck_forward.6} parent=0 // pred_region
    _
  $region33: #{bottleneck_forward.6} parent=0 // pred_fallthru
    _

// kernel: bottleneck_forward.5
$region0: #{bottleneck_forward.5}
  #allocation0 [shape = 'u32[]', space=smem, size = 0x4, offset = 0x4, fixed_abs, tag = 'smem constant byte address 0x4 - core index']
  #allocation1 [shape = 'u32[144,128]{1,0:T(1,128)}', space=vmem, size = 0x12000, scoped, tag = 'internal scratch']
  %s0 = inlined_call_operand.vmem [shape: f32[2,8,8,8], index: 0, kind: input, shape index: {}, may-alias: {0,1,2}]
  %s1 = inlined_call_operand.vmem [shape: f32[2,8,8,8], index: 1, kind: input, shape index: {}, may-alias: {0,1,2}]
  %s2 = inlined_call_operand.vmem [shape: f32[2,8,8,8], index: 2, kind: input, shape index: {}, may-alias: {0,1,2}]
  %s3 = inlined_call_operand.vmem [shape: f32[3,24,8], index: 3, kind: input, shape index: {}]
  %s4 = inlined_call_operand.vmem [shape: f32[1,8], index: 4, kind: input, shape index: {}]
  %s5 = inlined_call_operand.vmem [shape: f32[1,8], index: 5, kind: input, shape index: {}]
  %s6 = inlined_call_operand.vmem [shape: f32[2,8,8,8], index: 6, kind: output, shape index: {0}]
  %s7 = inlined_call_operand.vmem [shape: f32[2,2,8,8], index: 7, kind: output, shape index: {1}]
  %8 = xla_tuple %s6, %s7
  %s9 = sld [smem:[#allocation0]]
  $region65: #{bottleneck_forward.5} parent=0
    _
  %s11 = ssub.s32 1, %s9
  %s12 = scalar_select 0, %s11, %s9
  loop: start=0, step=1, limit=6
  $region2: #{bottleneck_forward.5} parent=0 // loop_pre_header
    _
  $region3: #{bottleneck_forward.5} parent=0 // loop_header
    %s14 = sphi 0, %s18
    %p15 = scmp.ge.s32.totalorder %s14, 6
    %s21 = sphi 0, %s33
    %s22 = sphi 0, %s29
    %s23 = sphi 0, %s21
    %s24 = sphi 0, %s22
    %s25 = sphi 0, %s23
    %s26 = sphi 0, %s24
    %s38 = sphi 0, %s40
    %s41 = sphi 0, %s38
    %s42 = sphi 0, %s41
    %s58 = sphi 0, %s42
    %s74 = sphi 0, %s76
    %s77 = sphi 0, %s74
    %s78 = sphi 0, %s77
    %s94 = sphi 0, %s78
    %s110 = sphi 0, %s112
    %s113 = sphi 0, %s110
    %s114 = sphi 0, %s113
    %s130 = sphi 0, %s114
    %s134 = sphi 0, %s134
    %s136 = sphi 0, %s134
    %s137 = sphi 0, %s136
    %s151 = sphi 0, %s137
    %s155 = sphi 0, %s155
    %s157 = sphi 0, %s155
    %s158 = sphi 0, %s157
    %s172 = sphi 0, %s158
    %s176 = sphi 0, %s176
    %s178 = sphi 0, %s176
    %s179 = sphi 0, %s178
    %s193 = sphi 0, %s179
    %s201 = sphi 0, %s203
    %s204 = sphi 0, %s201
    %s205 = sphi 0, %s204
    %s221 = sphi 0, %s205
    %s229 = sphi 0, %s231
    %s232 = sphi 0, %s229
    %s233 = sphi 0, %s232
    %s249 = sphi 0, %s233
  $region4: #{bottleneck_forward.5} parent=0 // loop_header_branch
    %17 = sbr.rel (%p15) target = $region8
  $region5: #{bottleneck_forward.5} parent=0 // loop_body
    %s19 = ssub.s32 %s14, 1
    %s20 = ssub.s32 %s14, 2
    %s27 = sadd.s32 1, %s22
    %p28 = scmp.ge.s32.totalorder %s27, 2
    %s29 = scalar_select %p28, 0, %s27
    %s30 = sadd.s32 1, %s21
    %s31 = scalar_select %p28, %s30, %s21
    %p32 = scmp.ge.s32.totalorder %s31, 2
    %s33 = scalar_select %p32, 0, %s31
    %s34 = ssub.s32 %s21, %s33
    %s35 = ssub.s32 %s22, %s29
    %s36 = sor.u32 %s34, %s35
    %p37 = scmp.eq.s32.totalorder %s36, 0
    %s39 = sadd.s32 %s38, 1
    %s40 = scalar_select %p37, %s38, %s39
    %p43 = pneg %p37
    %p44 = scmp.eq.s32.totalorder %s14, 3
    %p45 = por %p43, %p44
    %p46 = scmp.ne.s32.totalorder %s38, %s41
    %p47 = scmp.eq.s32.totalorder %s14, 0
    %p48 = por %p46, %p47
    %p49 = scmp.ne.s32.totalorder %s38, %s41
    %p50 = scmp.eq.s32.totalorder %s19, 3
    %p51 = por %p49, %p50
    %p52 = scmp.ne.s32.totalorder %s41, %s42
    %p53 = scmp.eq.s32.totalorder %s19, 0
    %p54 = por %p52, %p53
    %p55 = scmp.ne.s32.totalorder %s41, %s42
    %p56 = scmp.eq.s32.totalorder %s20, 3
    %p57 = por %p55, %p56
    %p59 = scmp.ne.s32.totalorder %s42, %s58
    %p60 = scmp.eq.s32.totalorder %s20, 0
    %p61 = por %p59, %p60
    %s62 = smul.u32 %s22, 4
    %s63 = ssub.s32 %s62, 1
    %p64 = scmp.gt.s32.totalorder %s63, 0
    %s65 = scalar_select %p64, %s63, 0
    %s66 = smul.u32 %s29, 4
    %s67 = ssub.s32 %s66, 1
    %p68 = scmp.gt.s32.totalorder %s67, 0
    %s69 = scalar_select %p68, %s67, 0
    %s70 = ssub.s32 %s21, %s33
    %s71 = ssub.s32 %s65, %s69
    %s72 = sor.u32 %s70, %s71
    %p73 = scmp.eq.s32.totalorder %s72, 0
    %s75 = sadd.s32 %s74, 1
    %s76 = scalar_select %p73, %s74, %s75
    %p79 = pneg %p73
    %p80 = scmp.eq.s32.totalorder %s14, 3
    %p81 = por %p79, %p80
    %p82 = scmp.ne.s32.totalorder %s74, %s77
    %p83 = scmp.eq.s32.totalorder %s14, 0
    %p84 = por %p82, %p83
    %p85 = scmp.ne.s32.totalorder %s74, %s77
    %p86 = scmp.eq.s32.totalorder %s19, 3
    %p87 = por %p85, %p86
    %p88 = scmp.ne.s32.totalorder %s77, %s78
    %p89 = scmp.eq.s32.totalorder %s19, 0
    %p90 = por %p88, %p89
    %p91 = scmp.ne.s32.totalorder %s77, %s78
    %p92 = scmp.eq.s32.totalorder %s20, 3
    %p93 = por %p91, %p92
    %p95 = scmp.ne.s32.totalorder %s78, %s94
    %p96 = scmp.eq.s32.totalorder %s20, 0
    %p97 = por %p95, %p96
    %s98 = sadd.s32 %s22, 1
    %s99 = smul.u32 %s98, 4
    %p100 = scmp.lt.s32.totalorder %s99, 7
    %s101 = scalar_select %p100, %s99, 7
    %s102 = sadd.s32 %s29, 1
    %s103 = smul.u32 %s102, 4
    %p104 = scmp.lt.s32.totalorder %s103, 7
    %s105 = scalar_select %p104, %s103, 7
    %s106 = ssub.s32 %s21, %s33
    %s107 = ssub.s32 %s101, %s105
    %s108 = sor.u32 %s106, %s107
    %p109 = scmp.eq.s32.totalorder %s108, 0
    %s111 = sadd.s32 %s110, 1
    %s112 = scalar_select %p109, %s110, %s111
    %p115 = pneg %p109
    %p116 = scmp.eq.s32.totalorder %s14, 3
    %p117 = por %p115, %p116
    %p118 = scmp.ne.s32.totalorder %s110, %s113
    %p119 = scmp.eq.s32.totalorder %s14, 0
    %p120 = por %p118, %p119
    %p121 = scmp.ne.s32.totalorder %s110, %s113
    %p122 = scmp.eq.s32.totalorder %s19, 3
    %p123 = por %p121, %p122
    %p124 = scmp.ne.s32.totalorder %s113, %s114
    %p125 = scmp.eq.s32.totalorder %s19, 0
    %p126 = por %p124, %p125
    %p127 = scmp.ne.s32.totalorder %s113, %s114
    %p128 = scmp.eq.s32.totalorder %s20, 3
    %p129 = por %p127, %p128
    %p131 = scmp.ne.s32.totalorder %s114, %s130
    %p132 = scmp.eq.s32.totalorder %s20, 0
    %p133 = por %p131, %p132
    %s135 = sadd.s32 %s134, 1
    %p138 = scmp.eq.s32.totalorder %s14, 3
    %p139 = scmp.ne.s32.totalorder %s134, %s136
    %p140 = scmp.eq.s32.totalorder %s14, 0
    %p141 = por %p139, %p140
    %p142 = scmp.ne.s32.totalorder %s134, %s136
    %p143 = scmp.eq.s32.totalorder %s19, 3
    %p144 = por %p142, %p143
    %p145 = scmp.ne.s32.totalorder %s136, %s137
    %p146 = scmp.eq.s32.totalorder %s19, 0
    %p147 = por %p145, %p146
    %p148 = scmp.ne.s32.totalorder %s136, %s137
    %p149 = scmp.eq.s32.totalorder %s20, 3
    %p150 = por %p148, %p149
    %p152 = scmp.ne.s32.totalorder %s137, %s151
    %p153 = scmp.eq.s32.totalorder %s20, 0
    %p154 = por %p152, %p153
    %s156 = sadd.s32 %s155, 1
    %p159 = scmp.eq.s32.totalorder %s14, 3
    %p160 = scmp.ne.s32.totalorder %s155, %s157
    %p161 = scmp.eq.s32.totalorder %s14, 0
    %p162 = por %p160, %p161
    %p163 = scmp.ne.s32.totalorder %s155, %s157
    %p164 = scmp.eq.s32.totalorder %s19, 3
    %p165 = por %p163, %p164
    %p166 = scmp.ne.s32.totalorder %s157, %s158
    %p167 = scmp.eq.s32.totalorder %s19, 0
    %p168 = por %p166, %p167
    %p169 = scmp.ne.s32.totalorder %s157, %s158
    %p170 = scmp.eq.s32.totalorder %s20, 3
    %p171 = por %p169, %p170
    %p173 = scmp.ne.s32.totalorder %s158, %s172
    %p174 = scmp.eq.s32.totalorder %s20, 0
    %p175 = por %p173, %p174
    %s177 = sadd.s32 %s176, 1
    %p180 = scmp.eq.s32.totalorder %s14, 3
    %p181 = scmp.ne.s32.totalorder %s176, %s178
    %p182 = scmp.eq.s32.totalorder %s14, 0
    %p183 = por %p181, %p182
    %p184 = scmp.ne.s32.totalorder %s176, %s178
    %p185 = scmp.eq.s32.totalorder %s19, 3
    %p186 = por %p184, %p185
    %p187 = scmp.ne.s32.totalorder %s178, %s179
    %p188 = scmp.eq.s32.totalorder %s19, 0
    %p189 = por %p187, %p188
    %p190 = scmp.ne.s32.totalorder %s178, %s179
    %p191 = scmp.eq.s32.totalorder %s20, 3
    %p192 = por %p190, %p191
    %p194 = scmp.ne.s32.totalorder %s179, %s193
    %p195 = scmp.eq.s32.totalorder %s20, 0
    %p196 = por %p194, %p195
    %s197 = ssub.s32 %s21, %s33
    %s198 = ssub.s32 %s22, %s29
    %s199 = sor.u32 %s197, %s198
    %p200 = scmp.eq.s32.totalorder %s199, 0
    %s202 = sadd.s32 %s201, 1
    %s203 = scalar_select %p200, %s201, %s202
    %p206 = pneg %p200
    %p207 = scmp.eq.s32.totalorder %s14, 3
    %p208 = por %p206, %p207
    %p209 = scmp.ne.s32.totalorder %s201, %s204
    %p210 = scmp.eq.s32.totalorder %s14, 0
    %p211 = por %p209, %p210
    %p212 = scmp.ne.s32.totalorder %s201, %s204
    %p213 = scmp.eq.s32.totalorder %s19, 3
    %p214 = por %p212, %p213
    %p215 = scmp.ne.s32.totalorder %s204, %s205
    %p216 = scmp.eq.s32.totalorder %s19, 0
    %p217 = por %p215, %p216
    %p218 = scmp.ne.s32.totalorder %s204, %s205
    %p219 = scmp.eq.s32.totalorder %s20, 3
    %p220 = por %p218, %p219
    %p222 = scmp.ne.s32.totalorder %s205, %s221
    %p223 = scmp.eq.s32.totalorder %s20, 0
    %p224 = por %p222, %p223
    %s225 = ssub.s32 %s21, %s33
    %s226 = ssub.s32 %s22, %s29
    %s227 = sor.u32 %s225, %s226
    %p228 = scmp.eq.s32.totalorder %s227, 0
    %s230 = sadd.s32 %s229, 1
    %s231 = scalar_select %p228, %s229, %s230
    %p234 = pneg %p228
    %p235 = scmp.eq.s32.totalorder %s14, 3
    %p236 = por %p234, %p235
    %p237 = scmp.ne.s32.totalorder %s229, %s232
    %p238 = scmp.eq.s32.totalorder %s14, 0
    %p239 = por %p237, %p238
    %p240 = scmp.ne.s32.totalorder %s229, %s232
    %p241 = scmp.eq.s32.totalorder %s19, 3
    %p242 = por %p240, %p241
    %p243 = scmp.ne.s32.totalorder %s232, %s233
    %p244 = scmp.eq.s32.totalorder %s19, 0
    %p245 = por %p243, %p244
    %p246 = scmp.ne.s32.totalorder %s232, %s233
    %p247 = scmp.eq.s32.totalorder %s20, 3
    %p248 = por %p246, %p247
    %p250 = scmp.ne.s32.totalorder %s233, %s249
    %p251 = scmp.eq.s32.totalorder %s20, 0
    %p252 = por %p250, %p251
    %p253 = scmp.le.s32.totalorder 1, %s14
    %p254 = scmp.lt.s32.totalorder %s14, 5
    %p255 = pnand %p253, %p254
    %p256 = pneg %p255
    // Predicated region
    $region9: #{bottleneck_forward.5} parent=5 // pred_check
      _
    $region10: #{bottleneck_forward.5} parent=5 // pred_check_branch
      %258 = sbr.rel (%p255) target = $region12
    $region11: #{bottleneck_forward.5} parent=5 // pred_region
      %s259 = ssub.s32 %s14, 1
      // Predicated region
      $region13: #{bottleneck_forward.5} parent=11 // pred_check
        %p260 = pneg %p147
      $region14: #{bottleneck_forward.5} parent=11 // pred_check_branch
        %262 = sbr.rel (%p260) target = $region16
      $region15: #{bottleneck_forward.5} parent=11 // pred_region
        _
      $region16: #{bottleneck_forward.5} parent=11 // pred_fallthru
        _
      // Predicated region
      $region17: #{bottleneck_forward.5} parent=11 // pred_check
        %p263 = pneg %p168
      $region18: #{bottleneck_forward.5} parent=11 // pred_check_branch
        %265 = sbr.rel (%p263) target = $region20
      $region19: #{bottleneck_forward.5} parent=11 // pred_region
        _
      $region20: #{bottleneck_forward.5} parent=11 // pred_fallthru
        _
      // Predicated region
      $region21: #{bottleneck_forward.5} parent=11 // pred_check
        %p266 = pneg %p189
      $region22: #{bottleneck_forward.5} parent=11 // pred_check_branch
        %268 = sbr.rel (%p266) target = $region24
      $region23: #{bottleneck_forward.5} parent=11 // pred_region
        _
      $region24: #{bottleneck_forward.5} parent=11 // pred_fallthru
        _
    $region12: #{bottleneck_forward.5} parent=5 // pred_fallthru
      _
    %p269 = scmp.lt.s32.totalorder %s14, 4
    // Predicated region
    $region25: #{bottleneck_forward.5} parent=5 // pred_check
      %p270 = pneg %p269
    $region26: #{bottleneck_forward.5} parent=5 // pred_check_branch
      %272 = sbr.rel (%p270) target = $region28
    $region27: #{bottleneck_forward.5} parent=5 // pred_region
      // Predicated region
      $region29: #{bottleneck_forward.5} parent=27 // pred_check
        %p273 = pneg %p48
      $region30: #{bottleneck_forward.5} parent=27 // pred_check_branch
        %275 = sbr.rel (%p273) target = $region32
      $region31: #{bottleneck_forward.5} parent=27 // pred_region
        %s276 = smul.u32 4, %s22
        %p277 = scmp.lt.s32.totalorder %s21, 1
        %s278 = scalar_select %p277, %s21, 1
        %p279 = scmp.lt.s32.totalorder %s276, 7
        %s280 = scalar_select %p279, %s276, 7
        %s281 = smul.addr %s278, 8
        %s282 = sadd.s32 %s280, %s281
        %s283 = smul.addr %s282, 8
        %s284 = scalar_lea.vmem %s0, %s283
        %s285 = smul.u32 4, %s22
      $region32: #{bottleneck_forward.5} parent=27 // pred_fallthru
        _
      // Predicated region
      $region33: #{bottleneck_forward.5} parent=27 // pred_check
        %p286 = pneg %p84
      $region34: #{bottleneck_forward.5} parent=27 // pred_check_branch
        %288 = sbr.rel (%p286) target = $region36
      $region35: #{bottleneck_forward.5} parent=27 // pred_region
        %s289 = smul.u32 %s22, 4
        %s290 = ssub.s32 %s289, 1
        %p291 = scmp.gt.s32.totalorder %s290, 0
        %s292 = scalar_select %p291, %s290, 0
        %p293 = scmp.lt.s32.totalorder %s21, 1
        %s294 = scalar_select %p293, %s21, 1
        %p295 = scmp.lt.s32.totalorder %s292, 7
        %s296 = scalar_select %p295, %s292, 7
        %s297 = smul.addr %s294, 8
        %s298 = sadd.s32 %s296, %s297
        %s299 = smul.addr %s298, 8
        %s300 = scalar_lea.vmem %s1, %s299
        %s301 = smul.u32 %s22, 4
        %s302 = ssub.s32 %s301, 1
        %p303 = scmp.gt.s32.totalorder %s302, 0
        %s304 = scalar_select %p303, %s302, 0
      $region36: #{bottleneck_forward.5} parent=27 // pred_fallthru
        _
      // Predicated region
      $region37: #{bottleneck_forward.5} parent=27 // pred_check
        %p305 = pneg %p120
      $region38: #{bottleneck_forward.5} parent=27 // pred_check_branch
        %307 = sbr.rel (%p305) target = $region40
      $region39: #{bottleneck_forward.5} parent=27 // pred_region
        %s308 = sadd.s32 %s22, 1
        %s309 = smul.u32 %s308, 4
        %p310 = scmp.lt.s32.totalorder %s309, 7
        %s311 = scalar_select %p310, %s309, 7
        %p312 = scmp.lt.s32.totalorder %s21, 1
        %s313 = scalar_select %p312, %s21, 1
        %p314 = scmp.lt.s32.totalorder %s311, 7
        %s315 = scalar_select %p314, %s311, 7
        %s316 = smul.addr %s313, 8
        %s317 = sadd.s32 %s315, %s316
        %s318 = smul.addr %s317, 8
        %s319 = scalar_lea.vmem %s2, %s318
        %s320 = sadd.s32 %s22, 1
        %s321 = smul.u32 %s320, 4
        %p322 = scmp.lt.s32.totalorder %s321, 7
        %s323 = scalar_select %p322, %s321, 7
      $region40: #{bottleneck_forward.5} parent=27 // pred_fallthru
        _
    $region28: #{bottleneck_forward.5} parent=5 // pred_fallthru
      _
    %p324 = scmp.le.s32.totalorder 1, %s14
    %p325 = scmp.lt.s32.totalorder %s14, 5
    %p326 = pnand %p324, %p325
    %p327 = pneg %p326
    // Predicated region
    $region41: #{bottleneck_forward.5} parent=5 // pred_check
      _
    $region42: #{bottleneck_forward.5} parent=5 // pred_check_branch
      %329 = sbr.rel (%p326) target = $region44
    $region43: #{bottleneck_forward.5} parent=5 // pred_region
      %s330 = ssub.s32 %s14, 1
      %s331 = smul.u32 4, %s24
      %p332 = scmp.lt.s32.totalorder %s23, 1
      %s333 = scalar_select %p332, %s23, 1
      %p334 = scmp.lt.s32.totalorder %s331, 7
      %s335 = scalar_select %p334, %s331, 7
      %s336 = smul.addr %s333, 8
      %s337 = sadd.s32 %s335, %s336
      %s338 = smul.addr %s337, 8
      %s339 = scalar_lea.vmem %s0, %s338
      %p340 = pneg %p54
      %p341 = pneg %p51
      %s342 = smul.u32 %s24, 4
      %s343 = ssub.s32 %s342, 1
      %p344 = scmp.gt.s32.totalorder %s343, 0
      %s345 = scalar_select %p344, %s343, 0
      %p346 = scmp.lt.s32.totalorder %s23, 1
      %s347 = scalar_select %p346, %s23, 1
      %p348 = scmp.lt.s32.totalorder %s345, 7
      %s349 = scalar_select %p348, %s345, 7
      %s350 = smul.addr %s347, 8
      %s351 = sadd.s32 %s349, %s350
      %s352 = smul.addr %s351, 8
      %s353 = scalar_lea.vmem %s1, %s352
      %p354 = pneg %p90
      %p355 = pneg %p87
      %s356 = sadd.s32 %s24, 1
      %s357 = smul.u32 %s356, 4
      %p358 = scmp.lt.s32.totalorder %s357, 7
      %s359 = scalar_select %p358, %s357, 7
      %p360 = scmp.lt.s32.totalorder %s23, 1
      %s361 = scalar_select %p360, %s23, 1
      %p362 = scmp.lt.s32.totalorder %s359, 7
      %s363 = scalar_select %p362, %s359, 7
      %s364 = smul.addr %s361, 8
      %s365 = sadd.s32 %s363, %s364
      %s366 = smul.addr %s365, 8
      %s367 = scalar_lea.vmem %s2, %s366
      %p368 = pneg %p126
      %p369 = pneg %p123
      %p370 = pneg %p147
      %p371 = pneg %p144
      %p372 = pneg %p168
      %p373 = pneg %p165
      %p374 = pneg %p189
      %p375 = pneg %p186
      %p376 = pneg %p217
      %p377 = pneg %p214
      %s378 = smul.u32 4, %s24
      %p379 = scmp.lt.s32.totalorder %s23, 1
      %s380 = scalar_select %p379, %s23, 1
      %p381 = scmp.lt.s32.totalorder %s378, 7
      %s382 = scalar_select %p381, %s378, 7
      %s383 = smul.addr %s380, 8
      %s384 = sadd.s32 %s382, %s383
      %s385 = smul.addr %s384, 8
      %s386 = scalar_lea.vmem %s6, %s385
      %p387 = pneg %p245
      %p388 = pneg %p242
      %p389 = scmp.lt.s32.totalorder %s23, 1
      %s390 = scalar_select %p389, %s23, 1
      %p391 = scmp.lt.s32.totalorder %s24, 1
      %s392 = scalar_select %p391, %s24, 1
      %s393 = smul.addr %s390, 2
      %s394 = sadd.s32 %s392, %s393
      %s395 = smul.addr %s394, 8
      %s396 = scalar_lea.vmem %s7, %s395
      %s397 = smul.u32 4, %s24
      %p398 = scmp.lt.s32.totalorder %s23, 1
      %s399 = scalar_select %p398, %s23, 1
      %p400 = scmp.lt.s32.totalorder %s397, 7
      %s401 = scalar_select %p400, %s397, 7
      %s402 = smul.addr %s399, 8
      %s403 = sadd.s32 %s401, %s402
      %s404 = smul.addr %s403, 8
      %s405 = scalar_lea.vmem %s0, %s404
      %s406 = smul.u32 4, %s24
      %s407 = smul.u32 %s24, 4
      %s408 = ssub.s32 %s407, 1
      %p409 = scmp.gt.s32.totalorder %s408, 0
      %s410 = scalar_select %p409, %s408, 0
      %p411 = scmp.lt.s32.totalorder %s23, 1
      %s412 = scalar_select %p411, %s23, 1
      %p413 = scmp.lt.s32.totalorder %s410, 7
      %s414 = scalar_select %p413, %s410, 7
      %s415 = smul.addr %s412, 8
      %s416 = sadd.s32 %s414, %s415
      %s417 = smul.addr %s416, 8
      %s418 = scalar_lea.vmem %s1, %s417
      %s419 = smul.u32 %s24, 4
      %s420 = ssub.s32 %s419, 1
      %p421 = scmp.gt.s32.totalorder %s420, 0
      %s422 = scalar_select %p421, %s420, 0
      %s423 = sadd.s32 %s24, 1
      %s424 = smul.u32 %s423, 4
      %p425 = scmp.lt.s32.totalorder %s424, 7
      %s426 = scalar_select %p425, %s424, 7
      %p427 = scmp.lt.s32.totalorder %s23, 1
      %s428 = scalar_select %p427, %s23, 1
      %p429 = scmp.lt.s32.totalorder %s426, 7
      %s430 = scalar_select %p429, %s426, 7
      %s431 = smul.addr %s428, 8
      %s432 = sadd.s32 %s430, %s431
      %s433 = smul.addr %s432, 8
      %s434 = scalar_lea.vmem %s2, %s433
      %s435 = sadd.s32 %s24, 1
      %s436 = smul.u32 %s435, 4
      %p437 = scmp.lt.s32.totalorder %s436, 7
      %s438 = scalar_select %p437, %s436, 7
      %s439 = smul.u32 4, %s24
      %p440 = scmp.lt.s32.totalorder %s23, 1
      %s441 = scalar_select %p440, %s23, 1
      %p442 = scmp.lt.s32.totalorder %s439, 7
      %s443 = scalar_select %p442, %s439, 7
      %s444 = smul.addr %s441, 8
      %s445 = sadd.s32 %s443, %s444
      %s446 = smul.addr %s445, 8
      %s447 = scalar_lea.vmem %s6, %s446
      %s448 = smul.u32 4, %s24
      %p449 = scmp.lt.s32.totalorder %s23, 1
      %s450 = scalar_select %p449, %s23, 1
      %p451 = scmp.lt.s32.totalorder %s24, 1
      %s452 = scalar_select %p451, %s24, 1
      %s453 = smul.addr %s450, 2
      %s454 = sadd.s32 %s452, %s453
      %s455 = smul.addr %s454, 8
      %s456 = scalar_lea.vmem %s7, %s455
      %v457 = vld [vmem:[%s4] sm:$0x1]
      %v458 = vld [vmem:[%s5] sm:$0x1]
      %v459 = vld [vmem:[%s405] sm:$0xff]
      %v460 = vld [vmem:[%s405 + $0x8] sm:$0xff]
      %v461 = vld [vmem:[%s405 + $0x10] sm:$0xff]
      %v462 = vld [vmem:[%s405 + $0x18] sm:$0xff]
      %v464 = vlaneseq
      %v465 = vshrl.u32 %v464, 7
      %v466 = vsub.s32 0, %v465
      %v467 = vrot.slane %v457, %v466
      %v469 = vmul.f32 %v459, %v467
      %v470 = vmul.f32 %v460, %v467
      %v471 = vmul.f32 %v461, %v467
      %v472 = vmul.f32 %v462, %v467
      %v474 = vlaneseq
      %v475 = vshrl.u32 %v474, 7
      %v476 = vsub.s32 0, %v475
      %v477 = vrot.slane %v458, %v476
      %v479 = vadd.f32 %v469, %v477
      %v480 = vadd.f32 %v470, %v477
      %v481 = vadd.f32 %v471, %v477
      %v482 = vadd.f32 %v472, %v477
      %v483 = vmax.f32 %v479, 0.0
      %v484 = vmax.f32 %v480, 0.0
      %v485 = vmax.f32 %v481, 0.0
      %v486 = vmax.f32 %v482, 0.0
      %v487 = vld [vmem:[%s418] sm:$0xff]
      %v488 = vmul.f32 %v487, %v467
      %v489 = vadd.f32 %v488, %v477
      %v490 = vmax.f32 %v489, 0.0
      %p491 = scmp.gt.s32.totalorder %s24, 0
      %s492 = scalar_select %p491, 1.0, 0.0
      %v493 = vstv %s492
      %v494 = vmul.f32 %v490, %v493
      %v495 = vld [vmem:[%s434] sm:$0xff]
      %v496 = vmul.f32 %v495, %v467
      %v497 = vadd.f32 %v496, %v477
      %v498 = vmax.f32 %v497, 0.0
      %p499 = scmp.lt.s32.totalorder %s24, 1
      %s500 = scalar_select %p499, 1.0, 0.0
      %v501 = vstv %s500
      %v502 = vmul.f32 %v498, %v501
      %v503 = vlaneseq
      %v504 = vshrl.u32 %v503, 7
      %v505 = vrot.slane %v494, 7
      %v506 = vrot.slane %v483, 7
      %v507 = vrot.slane %v484, 7
      %v508 = vrot.slane %v485, 7
      %v509 = vrot.slane %v486, 7
      %v510 = vrot.slane %v502, 7
      %vm511 = vcmp.ne.s32.totalorder %v504, 0
      %v512 = vsel %vm511, 1, 0
      %v513 = vcvt.s32.f32 %v512
      %v514 = vmul.f32 %v505, %v513
      %v515 = vmul.f32 %v506, %v513
      %v516 = vmul.f32 %v507, %v513
      %v517 = vmul.f32 %v508, %v513
      %v518 = vmul.f32 %v509, %v513
      %v519 = vmul.f32 %v510, %v513
      %524 = vrot.lane.b32.xlu0 %v515, 8
      %v525 = vpop.permute.xlu0 %524
      %526 = vrot.lane.b32.xlu0 %v516, 8
      %v527 = vpop.permute.xlu0 %526
      %528 = vrot.lane.b32.xlu0 %v517, 8
      %v529 = vpop.permute.xlu0 %528
      %530 = vrot.lane.b32.xlu0 %v518, 8
      %v531 = vpop.permute.xlu0 %530
      %537 = vrot.lane.b32.xlu0 %v516, 16
      %v538 = vpop.permute.xlu0 %537
      %539 = vrot.lane.b32.xlu0 %v517, 16
      %v540 = vpop.permute.xlu0 %539
      %541 = vrot.lane.b32.xlu0 %v518, 16
      %v542 = vpop.permute.xlu0 %541
      %543 = vrot.lane.b32.xlu0 %v519, 16
      %v544 = vpop.permute.xlu0 %543
      %vm549 = vcmask 64512
      %v550 = vsel %vm549, %v514, %v525
      %v551 = vsel %vm549, %v515, %v527
      %v552 = vsel %vm549, %v516, %v529
      %v553 = vsel %vm549, %v517, %v531
      %vm554 = vcmask 130048
      %v555 = vsel %vm554, %v550, %v538
      %v556 = vsel %vm554, %v551, %v540
      %v557 = vsel %vm554, %v552, %v542
      %v558 = vsel %vm554, %v553, %v544
      %v559 = vld [vmem:[%s3] sm:$0xff]
      %v560 = vld [vmem:[%s3 + $0x8] sm:$0xff]
      %v561 = vld [vmem:[%s3 + $0x10] sm:$0xff]
      %566 = vrot.lane.b32.xlu0 %v483, 8
      %v567 = vpop.permute.xlu0 %566
      %568 = vrot.lane.b32.xlu0 %v484, 8
      %v569 = vpop.permute.xlu0 %568
      %570 = vrot.lane.b32.xlu0 %v485, 8
      %v571 = vpop.permute.xlu0 %570
      %572 = vrot.lane.b32.xlu0 %v486, 8
      %v573 = vpop.permute.xlu0 %572
      %579 = vrot.lane.b32.xlu0 %v484, 16
      %v580 = vpop.permute.xlu0 %579
      %581 = vrot.lane.b32.xlu0 %v485, 16
      %v582 = vpop.permute.xlu0 %581
      %583 = vrot.lane.b32.xlu0 %v486, 16
      %v584 = vpop.permute.xlu0 %583
      %585 = vrot.lane.b32.xlu0 %v502, 16
      %v586 = vpop.permute.xlu0 %585
      %v591 = vsel %vm549, %v494, %v567
      %v592 = vsel %vm549, %v483, %v569
      %v593 = vsel %vm549, %v484, %v571
      %v594 = vsel %vm549, %v485, %v573
      %v595 = vsel %vm554, %v591, %v580
      %v596 = vsel %vm554, %v592, %v582
      %v597 = vsel %vm554, %v593, %v584
      %v598 = vsel %vm554, %v594, %v586
      %s599 = scalar_lea.vmem %s3, 24
      %v600 = vld [vmem:[%s599] sm:$0xff]
      %v601 = vld [vmem:[%s599 + $0x8] sm:$0xff]
      %v602 = vld [vmem:[%s599 + $0x10] sm:$0xff]
      %vm603 = vcmask 195584
      %v605 = vsel %vm603, %v595, 0
      %v608 = vsel %vm603, %v596, 0
      %v611 = vsel %vm603, %v597, 0
      %v614 = vsel %vm603, %v598, 0
      %616 = vmatprep.subr.mxu0 0.0
      %617 = vmatpush1.msra.mxu0 %v600
      %618 = vmatprep.subr.mxu0 0.0
      %619 = vmatpush1.msra.mxu0 %v601
      %620 = vmatprep.subr.mxu0 0.0
      %621 = vmatpush1.msra.mxu0 %v602
      %622 = vmatprep.subr.mxu0 0.0
      %623 = vmatpush1.msra.mxu0 0.0
      %624 = vmatprep.subr.mxu0 0.0
      %625 = vmatpush1.msra.mxu0 0.0
      %626 = vmatprep.subr.mxu0 0.0
      %627 = vmatpush1.msra.mxu0 0.0
      %628 = vmatprep.subr.mxu0 0.0
      %629 = vmatpush1.msra.mxu0 0.0
      %630 = vmatprep.subr.mxu0 0.0
      %631 = vmatpush1.msra.mxu0 0.0
      %632 = vmatprep.subr.mxu0 0.0
      %633 = vmatpush1.msra.mxu0 0.0
      %634 = vmatprep.subr.mxu0 0.0
      %635 = vmatpush1.msra.mxu0 0.0
      %636 = vmatprep.subr.mxu0 0.0
      %637 = vmatpush1.msra.mxu0 0.0
      %638 = vmatprep.subr.mxu0 0.0
      %639 = vmatpush1.msra.mxu0 0.0
      %640 = vmatprep.subr.mxu0 0.0
      %641 = vmatpush1.msra.mxu0 0.0
      %642 = vmatprep.subr.mxu0 0.0
      %643 = vmatpush1.msra.mxu0 0.0
      %644 = vmatprep.subr.mxu0 0.0
      %645 = vmatpush1.msra.mxu0 0.0
      %646 = vmatprep.subr.mxu0 0.0
      %647 = vmatpush1.msra.mxu0 0.0
      %648 = vmatprep.subr.mxu0 0.0
      %649 = vmatpush1.msra.mxu0 0.0
      %650 = vmatprep.subr.mxu0 0.0
      %651 = vmatpush1.msra.mxu0 0.0
      %652 = vmatprep.subr.mxu0 0.0
      %653 = vmatpush1.msra.mxu0 0.0
      %654 = vmatprep.subr.mxu0 0.0
      %655 = vmatpush1.msra.mxu0 0.0
      %656 = vmatprep.subr.mxu0 0.0
      %657 = vmatpush1.msra.mxu0 0.0
      %658 = vmatprep.subr.mxu0 0.0
      %659 = vmatpush1.msra.mxu0 0.0
      %660 = vmatprep.subr.mxu0 0.0
      %661 = vmatpush1.msra.mxu0 0.0
      %662 = vmatprep.subr.mxu0 0.0
      %663 = vmatpush1.msra.mxu0 0.0
      %664 = vmatprep.subr.mxu0 0.0
      %665 = vmatpush1.msra.mxu0 0.0
      %666 = vmatprep.subr.mxu0 0.0
      %667 = vmatpush1.msra.mxu0 0.0
      %668 = vmatprep.subr.mxu0 0.0
      %669 = vmatpush1.msra.mxu0 0.0
      %670 = vmatprep.subr.mxu0 0.0
      %671 = vmatpush1.msra.mxu0 0.0
      %672 = vmatprep.subr.mxu0 0.0
      %673 = vmatpush1.msra.mxu0 0.0
      %674 = vmatprep.subr.mxu0 0.0
      %675 = vmatpush1.msra.mxu0 0.0
      %676 = vmatprep.subr.mxu0 0.0
      %677 = vmatpush1.msra.mxu0 0.0
      %678 = vmatprep.subr.mxu0 0.0
      %679 = vmatpush1.msra.mxu0 0.0
      %680 = vmatprep.mubr.f32.mxu0 0.0
      %681 = vmatmul.mubr.f32.gmra.mrb[0].mxu0 %v605
      %v682 = vpop.f32.mrb[0].mxu0
      %v683 = vadd.f32 0.0, %v682
      %v684 = vpop.f32.mrb[0].mxu0
      %685 = vmatprep.mubr.f32.mxu0 0.0
      %686 = vmatmul.mubr.f32.gmra.mrb[0].mxu0 %v608
      %v687 = vpop.f32.mrb[0].mxu0
      %v688 = vadd.f32 0.0, %v687
      %v689 = vpop.f32.mrb[0].mxu0
      %690 = vmatprep.mubr.f32.mxu0 0.0
      %691 = vmatmul.mubr.f32.gmra.mrb[0].mxu0 %v611
      %v692 = vpop.f32.mrb[0].mxu0
      %v693 = vadd.f32 0.0, %v692
      %v694 = vpop.f32.mrb[0].mxu0
      %695 = vmatprep.mubr.f32.mxu0 0.0
      %696 = vmatmul.mubr.f32.gmra.mrb[0].mxu0 %v614
      %v697 = vpop.f32.mrb[0].mxu0
      %v698 = vadd.f32 0.0, %v697
      %v699 = vpop.f32.mrb[0].mxu0
      %700 = vdwg.mxu0
      %v702 = vsel %vm603, %v555, 0
      %v705 = vsel %vm603, %v556, 0
      %v708 = vsel %vm603, %v557, 0
      %v711 = vsel %vm603, %v558, 0
      %713 = vmatprep.subr.mxu0 0.0
      %714 = vmatpush1.msra.mxu0 %v559
      %715 = vmatprep.subr.mxu0 0.0
      %716 = vmatpush1.msra.mxu0 %v560
      %717 = vmatprep.subr.mxu0 0.0
      %718 = vmatpush1.msra.mxu0 %v561
      %719 = vmatprep.subr.mxu0 0.0
      %720 = vmatpush1.msra.mxu0 0.0
      %721 = vmatprep.subr.mxu0 0.0
      %722 = vmatpush1.msra.mxu0 0.0
      %723 = vmatprep.subr.mxu0 0.0
      %724 = vmatpush1.msra.mxu0 0.0
      %725 = vmatprep.subr.mxu0 0.0
      %726 = vmatpush1.msra.mxu0 0.0
      %727 = vmatprep.subr.mxu0 0.0
      %728 = vmatpush1.msra.mxu0 0.0
      %729 = vmatprep.subr.mxu0 0.0
      %730 = vmatpush1.msra.mxu0 0.0
      %731 = vmatprep.subr.mxu0 0.0
      %732 = vmatpush1.msra.mxu0 0.0
      %733 = vmatprep.subr.mxu0 0.0
      %734 = vmatpush1.msra.mxu0 0.0
      %735 = vmatprep.subr.mxu0 0.0
      %736 = vmatpush1.msra.mxu0 0.0
      %737 = vmatprep.subr.mxu0 0.0
      %738 = vmatpush1.msra.mxu0 0.0
      %739 = vmatprep.subr.mxu0 0.0
      %740 = vmatpush1.msra.mxu0 0.0
      %741 = vmatprep.subr.mxu0 0.0
      %742 = vmatpush1.msra.mxu0 0.0
      %743 = vmatprep.subr.mxu0 0.0
      %744 = vmatpush1.msra.mxu0 0.0
      %745 = vmatprep.subr.mxu0 0.0
      %746 = vmatpush1.msra.mxu0 0.0
      %747 = vmatprep.subr.mxu0 0.0
      %748 = vmatpush1.msra.mxu0 0.0
      %749 = vmatprep.subr.mxu0 0.0
      %750 = vmatpush1.msra.mxu0 0.0
      %751 = vmatprep.subr.mxu0 0.0
      %752 = vmatpush1.msra.mxu0 0.0
      %753 = vmatprep.subr.mxu0 0.0
      %754 = vmatpush1.msra.mxu0 0.0
      %755 = vmatprep.subr.mxu0 0.0
      %756 = vmatpush1.msra.mxu0 0.0
      %757 = vmatprep.subr.mxu0 0.0
      %758 = vmatpush1.msra.mxu0 0.0
      %759 = vmatprep.subr.mxu0 0.0
      %760 = vmatpush1.msra.mxu0 0.0
      %761 = vmatprep.subr.mxu0 0.0
      %762 = vmatpush1.msra.mxu0 0.0
      %763 = vmatprep.subr.mxu0 0.0
      %764 = vmatpush1.msra.mxu0 0.0
      %765 = vmatprep.subr.mxu0 0.0
      %766 = vmatpush1.msra.mxu0 0.0
      %767 = vmatprep.subr.mxu0 0.0
      %768 = vmatpush1.msra.mxu0 0.0
      %769 = vmatprep.subr.mxu0 0.0
      %770 = vmatpush1.msra.mxu0 0.0
      %771 = vmatprep.subr.mxu0 0.0
      %772 = vmatpush1.msra.mxu0 0.0
      %773 = vmatprep.subr.mxu0 0.0
      %774 = vmatpush1.msra.mxu0 0.0
      %775 = vmatprep.subr.mxu0 0.0
      %776 = vmatpush1.msra.mxu0 0.0
      %777 = vmatprep.mubr.f32.mxu0 0.0
      %778 = vmatmul.mubr.f32.gmra.mrb[0].mxu0 %v702
      %v779 = vpop.f32.mrb[0].mxu0
      %v780 = vadd.f32 %v683, %v779
      %v781 = vpop.f32.mrb[0].mxu0
      %782 = vmatprep.mubr.f32.mxu0 0.0
      %783 = vmatmul.mubr.f32.gmra.mrb[0].mxu0 %v705
      %v784 = vpop.f32.mrb[0].mxu0
      %v785 = vadd.f32 %v688, %v784
      %v786 = vpop.f32.mrb[0].mxu0
      %787 = vmatprep.mubr.f32.mxu0 0.0
      %788 = vmatmul.mubr.f32.gmra.mrb[0].mxu0 %v708
      %v789 = vpop.f32.mrb[0].mxu0
      %v790 = vadd.f32 %v693, %v789
      %v791 = vpop.f32.mrb[0].mxu0
      %792 = vmatprep.mubr.f32.mxu0 0.0
      %793 = vmatmul.mubr.f32.gmra.mrb[0].mxu0 %v711
      %v794 = vpop.f32.mrb[0].mxu0
      %v795 = vadd.f32 %v698, %v794
      %v796 = vpop.f32.mrb[0].mxu0
      %797 = vdwg.mxu0
      %v798 = vrot.slane %v494, 1
      %v799 = vrot.slane %v483, 1
      %v800 = vrot.slane %v484, 1
      %v801 = vrot.slane %v485, 1
      %v802 = vrot.slane %v486, 1
      %v803 = vrot.slane %v502, 1
      %vm804 = vcmp.ne.s32.totalorder %v504, 7
      %v805 = vsel %vm804, 1, 0
      %v806 = vcvt.s32.f32 %v805
      %v807 = vmul.f32 %v798, %v806
      %v808 = vmul.f32 %v799, %v806
      %v809 = vmul.f32 %v800, %v806
      %v810 = vmul.f32 %v801, %v806
      %v811 = vmul.f32 %v802, %v806
      %v812 = vmul.f32 %v803, %v806
      %817 = vrot.lane.b32.xlu0 %v808, 8
      %v818 = vpop.permute.xlu0 %817
      %819 = vrot.lane.b32.xlu0 %v809, 8
      %v820 = vpop.permute.xlu0 %819
      %821 = vrot.lane.b32.xlu0 %v810, 8
      %v822 = vpop.permute.xlu0 %821
      %823 = vrot.lane.b32.xlu0 %v811, 8
      %v824 = vpop.permute.xlu0 %823
      %830 = vrot.lane.b32.xlu0 %v809, 16
      %v831 = vpop.permute.xlu0 %830
      %832 = vrot.lane.b32.xlu0 %v810, 16
      %v833 = vpop.permute.xlu0 %832
      %834 = vrot.lane.b32.xlu0 %v811, 16
      %v835 = vpop.permute.xlu0 %834
      %836 = vrot.lane.b32.xlu0 %v812, 16
      %v837 = vpop.permute.xlu0 %836
      %v842 = vsel %vm549, %v807, %v818
      %v843 = vsel %vm549, %v808, %v820
      %v844 = vsel %vm549, %v809, %v822
      %v845 = vsel %vm549, %v810, %v824
      %v846 = vsel %vm554, %v842, %v831
      %v847 = vsel %vm554, %v843, %v833
      %v848 = vsel %vm554, %v844, %v835
      %v849 = vsel %vm554, %v845, %v837
      %s850 = scalar_lea.vmem %s3, 48
      %v851 = vld [vmem:[%s850] sm:$0xff]
      %v852 = vld [vmem:[%s850 + $0x8] sm:$0xff]
      %v853 = vld [vmem:[%s850 + $0x10] sm:$0xff]
      %v855 = vsel %vm603, %v846, 0
      %v858 = vsel %vm603, %v847, 0
      %v861 = vsel %vm603, %v848, 0
      %v864 = vsel %vm603, %v849, 0
      %866 = vmatprep.subr.mxu0 0.0
      %867 = vmatpush1.msra.mxu0 %v851
      %868 = vmatprep.subr.mxu0 0.0
      %869 = vmatpush1.msra.mxu0 %v852
      %870 = vmatprep.subr.mxu0 0.0
      %871 = vmatpush1.msra.mxu0 %v853
      %872 = vmatprep.subr.mxu0 0.0
      %873 = vmatpush1.msra.mxu0 0.0
      %874 = vmatprep.subr.mxu0 0.0
      %875 = vmatpush1.msra.mxu0 0.0
      %876 = vmatprep.subr.mxu0 0.0
      %877 = vmatpush1.msra.mxu0 0.0
      %878 = vmatprep.subr.mxu0 0.0
      %879 = vmatpush1.msra.mxu0 0.0
      %880 = vmatprep.subr.mxu0 0.0
      %881 = vmatpush1.msra.mxu0 0.0
      %882 = vmatprep.subr.mxu0 0.0
      %883 = vmatpush1.msra.mxu0 0.0
      %884 = vmatprep.subr.mxu0 0.0
      %885 = vmatpush1.msra.mxu0 0.0
      %886 = vmatprep.subr.mxu0 0.0
      %887 = vmatpush1.msra.mxu0 0.0
      %888 = vmatprep.subr.mxu0 0.0
      %889 = vmatpush1.msra.mxu0 0.0
      %890 = vmatprep.subr.mxu0 0.0
      %891 = vmatpush1.msra.mxu0 0.0
      %892 = vmatprep.subr.mxu0 0.0
      %893 = vmatpush1.msra.mxu0 0.0
      %894 = vmatprep.subr.mxu0 0.0
      %895 = vmatpush1.msra.mxu0 0.0
      %896 = vmatprep.subr.mxu0 0.0
      %897 = vmatpush1.msra.mxu0 0.0
      %898 = vmatprep.subr.mxu0 0.0
      %899 = vmatpush1.msra.mxu0 0.0
      %900 = vmatprep.subr.mxu0 0.0
      %901 = vmatpush1.msra.mxu0 0.0
      %902 = vmatprep.subr.mxu0 0.0
      %903 = vmatpush1.msra.mxu0 0.0
      %904 = vmatprep.subr.mxu0 0.0
      %905 = vmatpush1.msra.mxu0 0.0
      %906 = vmatprep.subr.mxu0 0.0
      %907 = vmatpush1.msra.mxu0 0.0
      %908 = vmatprep.subr.mxu0 0.0
      %909 = vmatpush1.msra.mxu0 0.0
      %910 = vmatprep.subr.mxu0 0.0
      %911 = vmatpush1.msra.mxu0 0.0
      %912 = vmatprep.subr.mxu0 0.0
      %913 = vmatpush1.msra.mxu0 0.0
      %914 = vmatprep.subr.mxu0 0.0
      %915 = vmatpush1.msra.mxu0 0.0
      %916 = vmatprep.subr.mxu0 0.0
      %917 = vmatpush1.msra.mxu0 0.0
      %918 = vmatprep.subr.mxu0 0.0
      %919 = vmatpush1.msra.mxu0 0.0
      %920 = vmatprep.subr.mxu0 0.0
      %921 = vmatpush1.msra.mxu0 0.0
      %922 = vmatprep.subr.mxu0 0.0
      %923 = vmatpush1.msra.mxu0 0.0
      %924 = vmatprep.subr.mxu0 0.0
      %925 = vmatpush1.msra.mxu0 0.0
      %926 = vmatprep.subr.mxu0 0.0
      %927 = vmatpush1.msra.mxu0 0.0
      %928 = vmatprep.subr.mxu0 0.0
      %929 = vmatpush1.msra.mxu0 0.0
      %930 = vmatprep.mubr.f32.mxu0 0.0
      %931 = vmatmul.mubr.f32.gmra.mrb[0].mxu0 %v855
      %v932 = vpop.f32.mrb[0].mxu0
      %v933 = vadd.f32 0.0, %v932
      %v934 = vpop.f32.mrb[0].mxu0
      %935 = vmatprep.mubr.f32.mxu0 0.0
      %936 = vmatmul.mubr.f32.gmra.mrb[0].mxu0 %v858
      %v937 = vpop.f32.mrb[0].mxu0
      %v938 = vadd.f32 0.0, %v937
      %v939 = vpop.f32.mrb[0].mxu0
      %940 = vmatprep.mubr.f32.mxu0 0.0
      %941 = vmatmul.mubr.f32.gmra.mrb[0].mxu0 %v861
      %v942 = vpop.f32.mrb[0].mxu0
      %v943 = vadd.f32 0.0, %v942
      %v944 = vpop.f32.mrb[0].mxu0
      %945 = vmatprep.mubr.f32.mxu0 0.0
      %946 = vmatmul.mubr.f32.gmra.mrb[0].mxu0 %v864
      %v947 = vpop.f32.mrb[0].mxu0
      %v948 = vadd.f32 0.0, %v947
      %v949 = vpop.f32.mrb[0].mxu0
      %950 = vdwg.mxu0
      %v951 = vadd.f32 %v780, %v933
      %v952 = vadd.f32 %v785, %v938
      %v953 = vadd.f32 %v790, %v943
      %v954 = vadd.f32 %v795, %v948
      %955 = vst.msk [vmem:[%s447] sm:$0xff] %vm549, %v951
      %956 = vst.msk [vmem:[%s447 + $0x8] sm:$0xff] %vm549, %v952
      %957 = vst.msk [vmem:[%s447 + $0x10] sm:$0xff] %vm549, %v953
      %958 = vst.msk [vmem:[%s447 + $0x18] sm:$0xff] %vm549, %v954
      %v959 = vsel %vm549, %v951, 0.0
      %v960 = vsel %vm549, %v952, 0.0
      %v961 = vadd.f32 %v959, %v960
      %v962 = vsel %vm549, %v953, 0.0
      %v963 = vadd.f32 %v961, %v962
      %v964 = vsel %vm549, %v954, 0.0
      %v965 = vadd.f32 %v963, %v964
      %v966 = vrot.slane %v965, 4
      %v967 = vadd.f32 %v965, %v966
      %v968 = vrot.slane %v967, 2
      %v969 = vadd.f32 %v967, %v968
      %v970 = vrot.slane %v969, 1
      %v971 = vadd.f32 %v969, %v970
      %v972 = vmul.f32 %v951, %v951
      %v973 = vmul.f32 %v952, %v952
      %v974 = vmul.f32 %v953, %v953
      %v975 = vmul.f32 %v954, %v954
      %v976 = vsel %vm549, %v972, 0.0
      %v977 = vsel %vm549, %v973, 0.0
      %v978 = vadd.f32 %v976, %v977
      %v979 = vsel %vm549, %v974, 0.0
      %v980 = vadd.f32 %v978, %v979
      %v981 = vsel %vm549, %v975, 0.0
      %v982 = vadd.f32 %v980, %v981
      %v983 = vrot.slane %v982, 4
      %v984 = vadd.f32 %v982, %v983
      %v985 = vrot.slane %v984, 2
      %v986 = vadd.f32 %v984, %v985
      %v987 = vrot.slane %v986, 1
      %v988 = vadd.f32 %v986, %v987
      %vm989 = vcmask 1040384
      %v990 = vsel %vm989, %v971, %v988
      %vm991 = vcmask 1041408
      %v992 = vsel %vm991, %v990, 0.0
      %993 = vst.msk [vmem:[%s456] sm:$0xff] %vm549, %v992
      %s994 = smul.u32 4, %s24
      %p995 = scmp.lt.s32.totalorder %s23, 1
      %s996 = scalar_select %p995, %s23, 1
      %p997 = scmp.lt.s32.totalorder %s994, 7
      %s998 = scalar_select %p997, %s994, 7
      %s999 = smul.addr %s996, 8
      %s1000 = sadd.s32 %s998, %s999
      %s1001 = smul.addr %s1000, 8
      %s1002 = scalar_lea.vmem %s6, %s1001
      %p1003 = scmp.lt.s32.totalorder %s23, 1
      %s1004 = scalar_select %p1003, %s23, 1
      %p1005 = scmp.lt.s32.totalorder %s24, 1
      %s1006 = scalar_select %p1005, %s24, 1
      %s1007 = smul.addr %s1004, 2
      %s1008 = sadd.s32 %s1006, %s1007
      %s1009 = smul.addr %s1008, 8
      %s1010 = scalar_lea.vmem %s7, %s1009
      // Predicated region
      $region45: #{bottleneck_forward.5} parent=43 // pred_check
        %p1011 = pneg %p214
      $region46: #{bottleneck_forward.5} parent=43 // pred_check_branch
        %1013 = sbr.rel (%p1011) target = $region48
      $region47: #{bottleneck_forward.5} parent=43 // pred_region
        %s1014 = smul.u32 4, %s24
      $region48: #{bottleneck_forward.5} parent=43 // pred_fallthru
        _
      // Predicated region
      $region49: #{bottleneck_forward.5} parent=43 // pred_check
        %p1015 = pneg %p242
      $region50: #{bottleneck_forward.5} parent=43 // pred_check_branch
        %1017 = sbr.rel (%p1015) target = $region52
      $region51: #{bottleneck_forward.5} parent=43 // pred_region
        _
      $region52: #{bottleneck_forward.5} parent=43 // pred_fallthru
        _
    $region44: #{bottleneck_forward.5} parent=5 // pred_fallthru
      _
    %p1018 = scmp.le.s32.totalorder 2, %s14
    // Predicated region
    $region53: #{bottleneck_forward.5} parent=5 // pred_check
      %p1019 = pneg %p1018
    $region54: #{bottleneck_forward.5} parent=5 // pred_check_branch
      %1021 = sbr.rel (%p1019) target = $region56
    $region55: #{bottleneck_forward.5} parent=5 // pred_region
      %s1022 = ssub.s32 %s14, 2
      // Predicated region
      $region57: #{bottleneck_forward.5} parent=55 // pred_check
        %p1023 = pneg %p220
      $region58: #{bottleneck_forward.5} parent=55 // pred_check_branch
        %1025 = sbr.rel (%p1023) target = $region60
      $region59: #{bottleneck_forward.5} parent=55 // pred_region
        %s1026 = smul.u32 4, %s26
        %p1027 = scmp.lt.s32.totalorder %s25, 1
        %s1028 = scalar_select %p1027, %s25, 1
        %p1029 = scmp.lt.s32.totalorder %s1026, 7
        %s1030 = scalar_select %p1029, %s1026, 7
        %s1031 = smul.addr %s1028, 8
        %s1032 = sadd.s32 %s1030, %s1031
        %s1033 = smul.addr %s1032, 8
        %s1034 = scalar_lea.vmem %s6, %s1033
      $region60: #{bottleneck_forward.5} parent=55 // pred_fallthru
        _
      // Predicated region
      $region61: #{bottleneck_forward.5} parent=55 // pred_check
        %p1035 = pneg %p248
      $region62: #{bottleneck_forward.5} parent=55 // pred_check_branch
        %1037 = sbr.rel (%p1035) target = $region64
      $region63: #{bottleneck_forward.5} parent=55 // pred_region
        %p1038 = scmp.lt.s32.totalorder %s25, 1
        %s1039 = scalar_select %p1038, %s25, 1
        %p1040 = scmp.lt.s32.totalorder %s26, 1
        %s1041 = scalar_select %p1040, %s26, 1
        %s1042 = smul.addr %s1039, 2
        %s1043 = sadd.s32 %s1041, %s1042
        %s1044 = smul.addr %s1043, 8
        %s1045 = scalar_lea.vmem %s7, %s1044
      $region64: #{bottleneck_forward.5} parent=55 // pred_fallthru
        _
    $region56: #{bottleneck_forward.5} parent=5 // pred_fallthru
      _
  $region6: #{bottleneck_forward.5} parent=0 // loop_footer
    %s18 = sadd.s32 1, %s14
  $region7: #{bottleneck_forward.5} parent=0 // loop_footer_branch
    %13 = sbr.rel target = $region3
  $region8: #{bottleneck_forward.5} parent=0 // loop_exit
    _

</llo_original>
